<compile_context>
chip_gen: v7x
topology: tpu7x:2x2x1
jax: 0.10.0
libtpu: 0.0.40
codegen_flags: <defaults>
</compile_context>

<pallas_src>
import functools
import math

import jax
import jax.numpy as jnp
from jax import lax
from jax.experimental import pallas as pl
from jax.experimental.pallas import tpu as pltpu

_INV_SQRT2 = 1.0 / math.sqrt(2.0)


def _gelu_exact(h):
    """torch.nn.GELU default (exact erf form), computed in f32."""
    return 0.5 * h * (1.0 + lax.erf(h * _INV_SQRT2))


def _round_up(x, m):
    return (x + m - 1) // m * m


# --------------------------------------------------------------------------------------
# Primary kernel: weights fully VMEM-resident, 1-D grid over token tiles.
# --------------------------------------------------------------------------------------
def _ffn_resident_kernel(x_ref, w1_ref, b1_ref, w2_ref, b2_ref, o_ref):
    # x:(tm,dim)  w1:(dim,hidden)  b1:(1,hidden)  w2:(hidden,dim)  b2:(1,dim)  o:(tm,dim)
    h = jnp.dot(x_ref[...], w1_ref[...], preferred_element_type=jnp.float32)
    h = _gelu_exact(h + b1_ref[...].astype(jnp.float32))
    y = jnp.dot(h.astype(w2_ref.dtype), w2_ref[...], preferred_element_type=jnp.float32)
    o_ref[...] = (y + b2_ref[...].astype(jnp.float32)).astype(o_ref.dtype)


# --------------------------------------------------------------------------------------
# Fallback kernel: hidden axis streamed as a K reduction (weights too big for VMEM).
# --------------------------------------------------------------------------------------
def _ffn_streamed_kernel(x_ref, w1_ref, b1_ref, w2_ref, b2_ref, o_ref, acc_ref):
    k = pl.program_id(1)

    @pl.when(k == 0)
    def _():
        acc_ref[...] = jnp.zeros_like(acc_ref)

    h = jnp.dot(x_ref[...], w1_ref[...], preferred_element_type=jnp.float32)
    h = _gelu_exact(h + b1_ref[...].astype(jnp.float32))
    acc_ref[...] += jnp.dot(h.astype(w2_ref.dtype), w2_ref[...],
                            preferred_element_type=jnp.float32)

    @pl.when(k == pl.num_programs(1) - 1)
    def _():
        o_ref[...] = (acc_ref[...] + b2_ref[...].astype(jnp.float32)).astype(o_ref.dtype)


def _vmem_capacity_bytes():
    try:
        return int(pltpu.get_tpu_info().vmem_capacity_bytes)
    except Exception:
        return 64 * 1024 * 1024  # conservative (v7x per-core VMEM)


def _resident_spec(shape):
    """Whole-array, single-buffered spec: the operand stays resident in VMEM."""
    index_map = lambda i: (0,) * len(shape)
    try:
        return pl.BlockSpec(shape, index_map, pipeline_mode=pl.Buffered(1))
    except Exception:  # older jax without pipeline_mode: default (double) buffering
        return pl.BlockSpec(shape, index_map)


@functools.partial(
    jax.jit,
    static_argnames=("block_m", "block_k", "vmem_limit_bytes", "force_streamed"))
def feed_forward(x, w1, b1, w2, b2, *, block_m=256, block_k=512,
                 vmem_limit_bytes=None, force_streamed=False):
    """x: [B, S, dim] -> [B, S, dim].  W1:[dim,hidden], W2:[hidden,dim] (pre-transposed)."""
    B, S, dim = x.shape
    hidden = w1.shape[1]
    N = B * S

    x2d = x.reshape(N, dim)
    b1_2d = b1.reshape(1, hidden)
    b2_2d = b2.reshape(1, dim)

    x_isz = jnp.dtype(x.dtype).itemsize
    w_isz = jnp.dtype(w1.dtype).itemsize

    if vmem_limit_bytes is None:
        # ~96 MiB on v5e/v6e (128 MiB physical), ~48 MiB on v7x (64 MiB per core).
        vmem_limit_bytes = min(int(0.75 * _vmem_capacity_bytes()), 96 * 1024 * 1024)
    budget = int(0.8 * vmem_limit_bytes)  # headroom for Mosaic internal scratch

    # ---- choose the M tile: multiple of 8, and >= 2 tiles when possible so the
    # "parallel" M axis can be split across v7x's 2 TensorCores.
    bm = max(8, _round_up(min(block_m, _round_up(N, 8)), 8))
    if N > 8 and pl.cdiv(N, bm) < 2:
        bm = max(8, _round_up(pl.cdiv(N, 2), 8))

    # ---- VMEM footprint of the resident-weight path.
    resident_weight_bytes = (2 * dim * hidden + hidden + dim) * w_isz  # single-buffered
    resident_tile_bytes = (4 * bm * dim * x_isz   # x + out tiles, double-buffered
                           + bm * hidden * 4      # (tm, hidden) f32 GELU intermediate
                           + bm * dim * 4)        # (tm, dim) f32 second-matmul result
    use_resident = (not force_streamed) and \
        (resident_weight_bytes + resident_tile_bytes <= budget)

    if use_resident:
        grid_m = pl.cdiv(N, bm)
        cost = pl.CostEstimate(
            flops=4 * N * dim * hidden,
            transcendentals=N * hidden,
            bytes_accessed=(2 * N * dim * x_isz                           # x + out
                            + (2 * dim * hidden + hidden + dim) * w_isz))  # weights once
        out2d = pl.pallas_call(
            _ffn_resident_kernel,
            out_shape=jax.ShapeDtypeStruct((N, dim), x.dtype),
            grid_spec=pltpu.PrefetchScalarGridSpec(
                num_scalar_prefetch=0,
                grid=(grid_m,),
                in_specs=[
                    pl.BlockSpec((bm, dim), lambda i: (i, 0)),  # x tile
                    _resident_spec((dim, hidden)),              # W1 (VMEM-resident)
                    _resident_spec((1, hidden)),                # b1
                    _resident_spec((hidden, dim)),              # W2 (VMEM-resident)
                    _resident_spec((1, dim)),                   # b2
                ],
                out_specs=pl.BlockSpec((bm, dim), lambda i: (i, 0)),
            ),
            compiler_params=pltpu.CompilerParams(
                dimension_semantics=("parallel",),
                vmem_limit_bytes=vmem_limit_bytes),
            cost_estimate=cost,
        )(x2d, w1, b1_2d, w2, b2_2d)
        return out2d.reshape(B, S, dim)

    # ---- fallback: stream W1/W2 over the hidden axis as a K reduction ----
    # block_k: prefer a multiple of 128 that divides hidden (no in-jit weight padding).
    bk = min(block_k, hidden)
    k_pad = hidden
    if bk != hidden and (hidden % bk != 0 or bk % 128 != 0):
        divisors = [c for c in range(128, min(block_k, hidden) + 1, 128) if hidden % c == 0]
        if divisors:
            bk = divisors[-1]
        else:
            bk = _round_up(min(block_k, hidden), 128)
            k_pad = _round_up(hidden, bk)
    if k_pad != hidden:
        # Exact no-op padding: GELU(0) == 0 and the padded W2 rows are zero.
        w1 = jnp.pad(w1, ((0, 0), (0, k_pad - hidden)))
        b1_2d = jnp.pad(b1_2d, ((0, 0), (0, k_pad - hidden)))
        w2 = jnp.pad(w2, ((0, k_pad - hidden), (0, 0)))
    grid_k = k_pad // bk

    # Grow the M tile so the MXU work per step dominates the fixed weight-slab DMA.
    def _step_bytes(m):
        return (4 * m * dim * x_isz                 # x + out tiles, double-buffered
                + 2 * (2 * dim * bk + bk) * w_isz   # W1/b1/W2 slabs, double-buffered
                + m * dim * 4                       # f32 accumulator scratch
                + m * bk * 4)                       # f32 GELU slab intermediate

    bm_s = bm
    while (bm_s * 2 <= 1024 and pl.cdiv(N, bm_s * 2) >= 2
           and _step_bytes(bm_s * 2) <= budget):
        bm_s *= 2
    grid_m = pl.cdiv(N, bm_s)

    cost = pl.CostEstimate(
        flops=4 * N * dim * k_pad,
        transcendentals=N * k_pad,
        bytes_accessed=(2 * N * dim * x_isz
                        + grid_m * (2 * dim * k_pad + k_pad + dim) * w_isz))

    out2d = pl.pallas_call(
        _ffn_streamed_kernel,
        out_shape=jax.ShapeDtypeStruct((N, dim), x.dtype),
        grid_spec=pltpu.PrefetchScalarGridSpec(
            num_scalar_prefetch=0,
            grid=(grid_m, grid_k),
            in_specs=[
                pl.BlockSpec((bm_s, dim), lambda i, k: (i, 0)),  # x tile (held over k)
                pl.BlockSpec((dim, bk), lambda i, k: (0, k)),    # W1 slab (streamed)
                pl.BlockSpec((1, bk), lambda i, k: (0, k)),      # b1 slab
                pl.BlockSpec((bk, dim), lambda i, k: (k, 0)),    # W2 slab (streamed)
                pl.BlockSpec((1, dim), lambda i, k: (0, 0)),     # b2
            ],
            out_specs=pl.BlockSpec((bm_s, dim), lambda i, k: (i, 0)),
            scratch_shapes=[pltpu.VMEM((bm_s, dim), jnp.float32)],
        ),
        compiler_params=pltpu.CompilerParams(
            dimension_semantics=("parallel", "arbitrary"),
            vmem_limit_bytes=vmem_limit_bytes),
        cost_estimate=cost,
    )(x2d, w1, b1_2d, w2, b2_2d)
    return out2d.reshape(B, S, dim)


def _reference(x, w1, b1, w2, b2):
    h = jnp.dot(x, w1, precision=lax.Precision.HIGHEST) + b1
    h = _gelu_exact(h)
    return jnp.dot(h, w2, precision=lax.Precision.HIGHEST) + b2


if __name__ == "__main__":
    # Small shapes consistent with FeedForward (production: dim=768, hidden=3072, seq=257).
    # Chosen to exercise: >= 2 parallel M tiles, a ragged last M tile (no wrapper padding),
    # and (for the fallback path) several K accumulation steps.
    batch, seq, dim, hidden = 2, 100, 128, 384

    key = jax.random.PRNGKey(0)
    kx, kw1, kb1, kw2, kb2 = jax.random.split(key, 5)

    x = jax.random.normal(kx, (batch, seq, dim), dtype=jnp.float32)

    # Deterministic PyTorch-Linear-style uniform init; weights stored pre-transposed.
    bound1 = 1.0 / math.sqrt(dim)
    bound2 = 1.0 / math.sqrt(hidden)
    w1 = jax.random.uniform(kw1, (dim, hidden), jnp.float32, -bound1, bound1)
    b1 = jax.random.uniform(kb1, (hidden,), jnp.float32, -bound1, bound1)
    w2 = jax.random.uniform(kw2, (hidden, dim), jnp.float32, -bound2, bound2)
    b2 = jax.random.uniform(kb2, (dim,), jnp.float32, -bound2, bound2)

    ref = _reference(x, w1, b1, w2, b2)

    # Primary path: VMEM-resident weights, ragged M handled by masked block stores.
    out = jax.block_until_ready(feed_forward(x, w1, b1, w2, b2, block_m=128))
    assert out.shape == x.shape, (out.shape, x.shape)
    err = float(jnp.max(jnp.abs(out - ref)))
    assert jnp.allclose(out, ref, atol=2e-3, rtol=2e-3), \
        f"resident path mismatch vs reference (max abs err {err})"

    # Fallback path: hidden-streamed K reduction (used when the weights exceed VMEM).
    out_s = jax.block_until_ready(
        feed_forward(x, w1, b1, w2, b2, block_m=64, block_k=128, force_streamed=True))
    err_s = float(jnp.max(jnp.abs(out_s - ref)))
    assert jnp.allclose(out_s, ref, atol=2e-3, rtol=2e-3), \
        f"streamed path mismatch vs reference (max abs err {err_s})"

    print("KERNEL_OK")
</pallas_src>

<mosaic_0001>
module attributes {stable_mosaic.version = 11 : i64} {
  func.func @_ffn_resident_kernel(%arg0: i32, %arg1: memref<128x128xf32, #tpu.memory_space<vmem>>, %arg2: memref<128x384xf32, #tpu.memory_space<vmem>>, %arg3: memref<1x384xf32, #tpu.memory_space<vmem>>, %arg4: memref<384x128xf32, #tpu.memory_space<vmem>>, %arg5: memref<1x128xf32, #tpu.memory_space<vmem>>, %arg6: memref<128x128xf32, #tpu.memory_space<vmem>>) attributes {dimension_semantics = [#tpu.dimension_semantics<parallel>], iteration_bounds = array<i64: 2>, scalar_prefetch = 0 : i64, scratch_operands = 0 : i64, tpu.core_type = #tpu.core_type<tc>, window_params = [{transform_indices = @transform_0, window_bounds = array<i64: 128, 128>}, {pipeline_mode = #tpu.pipeline_mode<synchronous>, transform_indices = @transform_1, window_bounds = array<i64: 128, 384>}, {pipeline_mode = #tpu.pipeline_mode<synchronous>, transform_indices = @transform_2, window_bounds = array<i64: 1, 384>}, {pipeline_mode = #tpu.pipeline_mode<synchronous>, transform_indices = @transform_3, window_bounds = array<i64: 384, 128>}, {pipeline_mode = #tpu.pipeline_mode<synchronous>, transform_indices = @transform_4, window_bounds = array<i64: 1, 128>}, {transform_indices = @transform_5, window_bounds = array<i64: 128, 128>}]} {
    %c0 = arith.constant 0 : index
    %c0_0 = arith.constant 0 : index
    %0 = vector.load %arg1[%c0, %c0_0] : memref<128x128xf32, #tpu.memory_space<vmem>>, vector<128x128xf32>
    %c0_1 = arith.constant 0 : index
    %c0_2 = arith.constant 0 : index
    %1 = vector.load %arg2[%c0_1, %c0_2] : memref<128x384xf32, #tpu.memory_space<vmem>>, vector<128x384xf32>
    %cst = arith.constant dense<0.000000e+00> : vector<128x384xf32>
    %2 = tpu.matmul %0, %1, %cst {dimension_numbers = #tpu.dot_dimension_numbers<[1], [0], [0], [1], [0, 0, 1, 1], [], []>} : vector<128x128xf32>, vector<128x384xf32>, vector<128x384xf32> -> vector<128x384xf32>
    %c0_3 = arith.constant 0 : index
    %c0_4 = arith.constant 0 : index
    %3 = vector.load %arg3[%c0_3, %c0_4] : memref<1x384xf32, #tpu.memory_space<vmem>>, vector<1x384xf32>
    %4 = vector.broadcast %3 : vector<1x384xf32> to vector<128x384xf32>
    %5 = arith.addf %2, %4 : vector<128x384xf32>
    %cst_5 = arith.constant 5.000000e-01 : f32
    %6 = vector.broadcast %cst_5 : f32 to vector<128x384xf32>
    %7 = arith.mulf %6, %5 : vector<128x384xf32>
    %cst_6 = arith.constant 0.707106769 : f32
    %8 = vector.broadcast %cst_6 : f32 to vector<128x384xf32>
    %9 = arith.mulf %5, %8 : vector<128x384xf32>
    %10 = math.erf %9 : vector<128x384xf32>
    %cst_7 = arith.constant 1.000000e+00 : f32
    %11 = vector.broadcast %cst_7 : f32 to vector<128x384xf32>
    %12 = arith.addf %11, %10 : vector<128x384xf32>
    %13 = arith.mulf %7, %12 : vector<128x384xf32>
    %c0_8 = arith.constant 0 : index
    %c0_9 = arith.constant 0 : index
    %14 = vector.load %arg4[%c0_8, %c0_9] : memref<384x128xf32, #tpu.memory_space<vmem>>, vector<384x128xf32>
    %cst_10 = arith.constant dense<0.000000e+00> : vector<128x128xf32>
    %15 = tpu.matmul %13, %14, %cst_10 {dimension_numbers = #tpu.dot_dimension_numbers<[1], [0], [0], [1], [0, 0, 1, 1], [], []>} : vector<128x384xf32>, vector<384x128xf32>, vector<128x128xf32> -> vector<128x128xf32>
    %c0_11 = arith.constant 0 : index
    %c0_12 = arith.constant 0 : index
    %16 = vector.load %arg5[%c0_11, %c0_12] : memref<1x128xf32, #tpu.memory_space<vmem>>, vector<1x128xf32>
    %17 = vector.broadcast %16 : vector<1x128xf32> to vector<128x128xf32>
    %18 = arith.addf %15, %17 : vector<128x128xf32>
    %c0_13 = arith.constant 0 : index
    %c0_14 = arith.constant 0 : index
    %19 = vector.load %arg6[%c0_13, %c0_14] : memref<128x128xf32, #tpu.memory_space<vmem>>, vector<128x128xf32>
    tpu.vector_store %arg6[%c0_13, %c0_14], %18 {strides = array<i32>} : memref<128x128xf32, #tpu.memory_space<vmem>>, vector<128x128xf32>,
    return
  }
  func.func @transform_0(%arg0: i32) -> (i32, i32) {
    %c0_i32 = arith.constant 0 : i32
    %c0_i32_0 = arith.constant 0 : i32
    return %arg0, %c0_i32 : i32, i32
  }
  func.func @transform_1(%arg0: i32) -> (i32, i32) {
    %c0_i32 = arith.constant 0 : i32
    %c0_i32_0 = arith.constant 0 : i32
    %c0_i32_1 = arith.constant 0 : i32
    return %c0_i32, %c0_i32_0 : i32, i32
  }
  func.func @transform_2(%arg0: i32) -> (i32, i32) {
    %c0_i32 = arith.constant 0 : i32
    %c0_i32_0 = arith.constant 0 : i32
    %c0_i32_1 = arith.constant 0 : i32
    return %c0_i32, %c0_i32_0 : i32, i32
  }
  func.func @transform_3(%arg0: i32) -> (i32, i32) {
    %c0_i32 = arith.constant 0 : i32
    %c0_i32_0 = arith.constant 0 : i32
    %c0_i32_1 = arith.constant 0 : i32
    return %c0_i32, %c0_i32_0 : i32, i32
  }
  func.func @transform_4(%arg0: i32) -> (i32, i32) {
    %c0_i32 = arith.constant 0 : i32
    %c0_i32_0 = arith.constant 0 : i32
    %c0_i32_1 = arith.constant 0 : i32
    return %c0_i32, %c0_i32_0 : i32, i32
  }
  func.func @transform_5(%arg0: i32) -> (i32, i32) {
    %c0_i32 = arith.constant 0 : i32
    %c0_i32_0 = arith.constant 0 : i32
    return %arg0, %c0_i32 : i32, i32
  }
}

</mosaic_0001>

<llo_original>
// kernel: feed_forward.1
$region0: #{feed_forward.1}
  #allocation0 [shape = 'u32[]', space=smem, size = 0x4, offset = 0x4, fixed_abs, tag = 'smem constant byte address 0x4 - core index']
  #allocation1 [shape = 'u32[144,128]{1,0:T(1,128)}', space=vmem, size = 0x12000, scoped, tag = 'internal scratch']
  %s0 = inlined_call_operand.vmem [shape: f32[200,128], index: 0, kind: input, shape index: {}]
  %s1 = inlined_call_operand.vmem [shape: f32[128,384], index: 1, kind: input, shape index: {}]
  %s2 = inlined_call_operand.vmem [shape: f32[1,384], index: 2, kind: input, shape index: {}]
  %s3 = inlined_call_operand.vmem [shape: f32[384,128], index: 3, kind: input, shape index: {}]
  %s4 = inlined_call_operand.vmem [shape: f32[1,128], index: 4, kind: input, shape index: {}]
  %s5 = inlined_call_operand.vmem [shape: f32[200,128], index: 5, kind: output, shape index: {}]
  %s6 = sld [smem:[#allocation0]]
  $region101: #{feed_forward.1} parent=0
    _
  %s8 = ssub.s32 1, %s6
  %s9 = scalar_select 0, %s8, %s6
  $region1: #{feed_forward.1} parent=0
    #allocation2 [shape = 'u8[131072]{0}', space=vmem, size = 0x20000, scoped, tag = 'output window, operand 0']
    loop: start=0, step=1, limit=4
    $region2: #{feed_forward.1} parent=1 // loop_pre_header
      _
    $region3: #{feed_forward.1} parent=1 // loop_header
      %s11 = sphi 0, %s15
      %p12 = scmp.ge.s32.totalorder %s11, 4
      %s21 = sphi 0, %s23
      %s24 = sphi 0, %s21
      %s25 = sphi 0, %s24
      %s41 = sphi 0, %s25
      %s45 = sphi 0, %s45
      %s47 = sphi 0, %s45
      %s48 = sphi 0, %s47
      %s62 = sphi 0, %s48
      %s66 = sphi 0, %s66
      %s68 = sphi 0, %s66
      %s69 = sphi 0, %s68
      %s83 = sphi 0, %s69
      %s87 = sphi 0, %s87
      %s89 = sphi 0, %s87
      %s90 = sphi 0, %s89
      %s104 = sphi 0, %s90
      %s108 = sphi 0, %s108
      %s110 = sphi 0, %s108
      %s111 = sphi 0, %s110
      %s125 = sphi 0, %s111
      %s131 = sphi 0, %s133
      %s134 = sphi 0, %s131
      %s135 = sphi 0, %s134
      %s151 = sphi 0, %s135
    $region4: #{feed_forward.1} parent=1 // loop_header_branch
      %14 = sbr.rel (%p12) target = $region8
    $region5: #{feed_forward.1} parent=1 // loop_body
      %s16 = ssub.s32 %s11, 1
      %s17 = ssub.s32 %s11, 2
      %s18 = sadd.s32 %s11, 1
      %s19 = ssub.s32 %s11, %s18
      %p20 = scmp.eq.s32.totalorder %s19, 0
      %s22 = sadd.s32 %s21, 1
      %s23 = scalar_select %p20, %s21, %s22
      %p26 = pneg %p20
      %p27 = scmp.eq.s32.totalorder %s11, 1
      %p28 = por %p26, %p27
      %p29 = scmp.ne.s32.totalorder %s21, %s24
      %p30 = scmp.eq.s32.totalorder %s11, 0
      %p31 = por %p29, %p30
      %p32 = scmp.ne.s32.totalorder %s21, %s24
      %p33 = scmp.eq.s32.totalorder %s16, 1
      %p34 = por %p32, %p33
      %p35 = scmp.ne.s32.totalorder %s24, %s25
      %p36 = scmp.eq.s32.totalorder %s16, 0
      %p37 = por %p35, %p36
      %p38 = scmp.ne.s32.totalorder %s24, %s25
      %p39 = scmp.eq.s32.totalorder %s17, 1
      %p40 = por %p38, %p39
      %p42 = scmp.ne.s32.totalorder %s25, %s41
      %p43 = scmp.eq.s32.totalorder %s17, 0
      %p44 = por %p42, %p43
      %s46 = sadd.s32 %s45, 1
      %p49 = scmp.eq.s32.totalorder %s11, 1
      %p50 = scmp.ne.s32.totalorder %s45, %s47
      %p51 = scmp.eq.s32.totalorder %s11, 0
      %p52 = por %p50, %p51
      %p53 = scmp.ne.s32.totalorder %s45, %s47
      %p54 = scmp.eq.s32.totalorder %s16, 1
      %p55 = por %p53, %p54
      %p56 = scmp.ne.s32.totalorder %s47, %s48
      %p57 = scmp.eq.s32.totalorder %s16, 0
      %p58 = por %p56, %p57
      %p59 = scmp.ne.s32.totalorder %s47, %s48
      %p60 = scmp.eq.s32.totalorder %s17, 1
      %p61 = por %p59, %p60
      %p63 = scmp.ne.s32.totalorder %s48, %s62
      %p64 = scmp.eq.s32.totalorder %s17, 0
      %p65 = por %p63, %p64
      %s67 = sadd.s32 %s66, 1
      %p70 = scmp.eq.s32.totalorder %s11, 1
      %p71 = scmp.ne.s32.totalorder %s66, %s68
      %p72 = scmp.eq.s32.totalorder %s11, 0
      %p73 = por %p71, %p72
      %p74 = scmp.ne.s32.totalorder %s66, %s68
      %p75 = scmp.eq.s32.totalorder %s16, 1
      %p76 = por %p74, %p75
      %p77 = scmp.ne.s32.totalorder %s68, %s69
      %p78 = scmp.eq.s32.totalorder %s16, 0
      %p79 = por %p77, %p78
      %p80 = scmp.ne.s32.totalorder %s68, %s69
      %p81 = scmp.eq.s32.totalorder %s17, 1
      %p82 = por %p80, %p81
      %p84 = scmp.ne.s32.totalorder %s69, %s83
      %p85 = scmp.eq.s32.totalorder %s17, 0
      %p86 = por %p84, %p85
      %s88 = sadd.s32 %s87, 1
      %p91 = scmp.eq.s32.totalorder %s11, 1
      %p92 = scmp.ne.s32.totalorder %s87, %s89
      %p93 = scmp.eq.s32.totalorder %s11, 0
      %p94 = por %p92, %p93
      %p95 = scmp.ne.s32.totalorder %s87, %s89
      %p96 = scmp.eq.s32.totalorder %s16, 1
      %p97 = por %p95, %p96
      %p98 = scmp.ne.s32.totalorder %s89, %s90
      %p99 = scmp.eq.s32.totalorder %s16, 0
      %p100 = por %p98, %p99
      %p101 = scmp.ne.s32.totalorder %s89, %s90
      %p102 = scmp.eq.s32.totalorder %s17, 1
      %p103 = por %p101, %p102
      %p105 = scmp.ne.s32.totalorder %s90, %s104
      %p106 = scmp.eq.s32.totalorder %s17, 0
      %p107 = por %p105, %p106
      %s109 = sadd.s32 %s108, 1
      %p112 = scmp.eq.s32.totalorder %s11, 1
      %p113 = scmp.ne.s32.totalorder %s108, %s110
      %p114 = scmp.eq.s32.totalorder %s11, 0
      %p115 = por %p113, %p114
      %p116 = scmp.ne.s32.totalorder %s108, %s110
      %p117 = scmp.eq.s32.totalorder %s16, 1
      %p118 = por %p116, %p117
      %p119 = scmp.ne.s32.totalorder %s110, %s111
      %p120 = scmp.eq.s32.totalorder %s16, 0
      %p121 = por %p119, %p120
      %p122 = scmp.ne.s32.totalorder %s110, %s111
      %p123 = scmp.eq.s32.totalorder %s17, 1
      %p124 = por %p122, %p123
      %p126 = scmp.ne.s32.totalorder %s111, %s125
      %p127 = scmp.eq.s32.totalorder %s17, 0
      %p128 = por %p126, %p127
      %s129 = ssub.s32 %s11, %s18
      %p130 = scmp.eq.s32.totalorder %s129, 0
      %s132 = sadd.s32 %s131, 1
      %s133 = scalar_select %p130, %s131, %s132
      %p136 = pneg %p130
      %p137 = scmp.eq.s32.totalorder %s11, 1
      %p138 = por %p136, %p137
      %p139 = scmp.ne.s32.totalorder %s131, %s134
      %p140 = scmp.eq.s32.totalorder %s11, 0
      %p141 = por %p139, %p140
      %p142 = scmp.ne.s32.totalorder %s131, %s134
      %p143 = scmp.eq.s32.totalorder %s16, 1
      %p144 = por %p142, %p143
      %p145 = scmp.ne.s32.totalorder %s134, %s135
      %p146 = scmp.eq.s32.totalorder %s16, 0
      %p147 = por %p145, %p146
      %p148 = scmp.ne.s32.totalorder %s134, %s135
      %p149 = scmp.eq.s32.totalorder %s17, 1
      %p150 = por %p148, %p149
      %p152 = scmp.ne.s32.totalorder %s135, %s151
      %p153 = scmp.eq.s32.totalorder %s17, 0
      %p154 = por %p152, %p153
      %p155 = scmp.le.s32.totalorder 1, %s11
      %p156 = scmp.lt.s32.totalorder %s11, 3
      %p157 = pnand %p155, %p156
      %p158 = pneg %p157
      // Predicated region
      $region9: #{feed_forward.1} parent=5 // pred_check
        _
      $region10: #{feed_forward.1} parent=5 // pred_check_branch
        %160 = sbr.rel (%p157) target = $region12
      $region11: #{feed_forward.1} parent=5 // pred_region
        %s161 = ssub.s32 %s11, 1
        // Predicated region
        $region13: #{feed_forward.1} parent=11 // pred_check
          %p162 = pneg %p58
        $region14: #{feed_forward.1} parent=11 // pred_check_branch
          %164 = sbr.rel (%p162) target = $region16
        $region15: #{feed_forward.1} parent=11 // pred_region
          _
        $region16: #{feed_forward.1} parent=11 // pred_fallthru
          _
        // Predicated region
        $region17: #{feed_forward.1} parent=11 // pred_check
          %p165 = pneg %p79
        $region18: #{feed_forward.1} parent=11 // pred_check_branch
          %167 = sbr.rel (%p165) target = $region20
        $region19: #{feed_forward.1} parent=11 // pred_region
          _
        $region20: #{feed_forward.1} parent=11 // pred_fallthru
          _
        // Predicated region
        $region21: #{feed_forward.1} parent=11 // pred_check
          %p168 = pneg %p100
        $region22: #{feed_forward.1} parent=11 // pred_check_branch
          %170 = sbr.rel (%p168) target = $region24
        $region23: #{feed_forward.1} parent=11 // pred_region
          _
        $region24: #{feed_forward.1} parent=11 // pred_fallthru
          _
        // Predicated region
        $region25: #{feed_forward.1} parent=11 // pred_check
          %p171 = pneg %p121
        $region26: #{feed_forward.1} parent=11 // pred_check_branch
          %173 = sbr.rel (%p171) target = $region28
        $region27: #{feed_forward.1} parent=11 // pred_region
          _
        $region28: #{feed_forward.1} parent=11 // pred_fallthru
          _
      $region12: #{feed_forward.1} parent=5 // pred_fallthru
        _
      %p174 = scmp.lt.s32.totalorder %s11, 2
      // Predicated region
      $region29: #{feed_forward.1} parent=5 // pred_check
        %p175 = pneg %p174
      $region30: #{feed_forward.1} parent=5 // pred_check_branch
        %177 = sbr.rel (%p175) target = $region32
      $region31: #{feed_forward.1} parent=5 // pred_region
        // Predicated region
        $region33: #{feed_forward.1} parent=31 // pred_check
          %p178 = pneg %p31
        $region34: #{feed_forward.1} parent=31 // pred_check_branch
          %180 = sbr.rel (%p178) target = $region36
        $region35: #{feed_forward.1} parent=31 // pred_region
          %s181 = smul.u32 16, %s11
          %s182 = ssub.s32 25, %s181
          %p183 = scmp.lt.s32.totalorder %s182, 16
          %s184 = scalar_select %p183, %s182, 16
          %s185 = smul.u32 128, %s184
          %p186 = scmp.lt.s32.totalorder %s181, 24
          %s187 = scalar_select %p186, %s181, 24
          %s188 = smul.addr %s187, 8
          %s189 = scalar_lea.vmem %s0, %s188
          %s190 = smul.u32 16, %s11
          %s191 = ssub.s32 25, %s190
          %p192 = scmp.lt.s32.totalorder %s191, 16
          %s193 = scalar_select %p192, %s191, 16
          %s194 = smul.u32 128, %s193
        $region36: #{feed_forward.1} parent=31 // pred_fallthru
          _
      $region32: #{feed_forward.1} parent=5 // pred_fallthru
        _
      %p195 = scmp.le.s32.totalorder 1, %s11
      %p196 = scmp.lt.s32.totalorder %s11, 3
      %p197 = pnand %p195, %p196
      %p198 = pneg %p197
      // Predicated region
      $region37: #{feed_forward.1} parent=5 // pred_check
        _
      $region38: #{feed_forward.1} parent=5 // pred_check_branch
        %200 = sbr.rel (%p197) target = $region40
      $region39: #{feed_forward.1} parent=5 // pred_region
        %s201 = ssub.s32 %s11, 1
        %s202 = smul.u32 16, %s16
        %s203 = ssub.s32 25, %s202
        %p204 = scmp.lt.s32.totalorder %s203, 16
        %s205 = scalar_select %p204, %s203, 16
        %s206 = smul.u32 128, %s205
        %p207 = scmp.lt.s32.totalorder %s202, 24
        %s208 = scalar_select %p207, %s202, 24
        %s209 = smul.addr %s208, 8
        %s210 = scalar_lea.vmem %s0, %s209
        %p211 = pneg %p37
        %p212 = pneg %p34
        %p213 = pneg %p58
        %p214 = pneg %p55
        %p215 = pneg %p79
        %p216 = pneg %p76
        %p217 = pneg %p100
        %p218 = pneg %p97
        %p219 = pneg %p121
        %p220 = pneg %p118
        %p221 = pneg %p147
        %p222 = pneg %p144
        %s223 = sand.u32 %s134, 1
        %s224 = sand.u32 %s134, 1
        %s225 = smul.addr %s224, 128
        %s226 = scalar_lea.vmem [#allocation2], %s225
        %s227 = smul.u32 16, %s16
        %s228 = ssub.s32 25, %s227
        %p229 = scmp.lt.s32.totalorder %s228, 16
        %s230 = scalar_select %p229, %s228, 16
        %s231 = smul.u32 128, %s230
        %p232 = scmp.lt.s32.totalorder %s227, 24
        %s233 = scalar_select %p232, %s227, 24
        %s234 = smul.addr %s233, 8
        %s235 = scalar_lea.vmem %s0, %s234
        %s236 = smul.u32 16, %s16
        %s237 = ssub.s32 25, %s236
        %p238 = scmp.lt.s32.totalorder %s237, 16
        %s239 = scalar_select %p238, %s237, 16
        %s240 = smul.u32 128, %s239
        %s241 = smul.u32 16, %s16
        %s242 = ssub.s32 25, %s241
        %p243 = scmp.lt.s32.totalorder %s242, 16
        %s244 = scalar_select %p243, %s242, 16
        %s245 = smul.u32 128, %s244
        %v246 = vld [vmem:[%s235] sm:$0xff]
        %v247 = vld [vmem:[%s235 + $0x8] sm:$0xff]
        %v248 = vld [vmem:[%s235 + $0x10] sm:$0xff]
        %v249 = vld [vmem:[%s235 + $0x18] sm:$0xff]
        %v250 = vld [vmem:[%s235 + $0x20] sm:$0xff]
        %v251 = vld [vmem:[%s235 + $0x28] sm:$0xff]
        %v252 = vld [vmem:[%s235 + $0x30] sm:$0xff]
        %v253 = vld [vmem:[%s235 + $0x38] sm:$0xff]
        %v254 = vld [vmem:[%s235 + $0x40] sm:$0xff]
        %v255 = vld [vmem:[%s235 + $0x48] sm:$0xff]
        %v256 = vld [vmem:[%s235 + $0x50] sm:$0xff]
        %v257 = vld [vmem:[%s235 + $0x58] sm:$0xff]
        %v258 = vld [vmem:[%s235 + $0x60] sm:$0xff]
        %v259 = vld [vmem:[%s235 + $0x68] sm:$0xff]
        %v260 = vld [vmem:[%s235 + $0x70] sm:$0xff]
        %v261 = vld [vmem:[%s235 + $0x78] sm:$0xff]
        %v262 = vld [vmem:[%s1] sm:$0xff]
        %v263 = vld [vmem:[%s1 + $0x8] sm:$0xff]
        %v264 = vld [vmem:[%s1 + $0x10] sm:$0xff]
        %v265 = vld [vmem:[%s1 + $0x18] sm:$0xff]
        %v266 = vld [vmem:[%s1 + $0x20] sm:$0xff]
        %v267 = vld [vmem:[%s1 + $0x28] sm:$0xff]
        %v268 = vld [vmem:[%s1 + $0x30] sm:$0xff]
        %v269 = vld [vmem:[%s1 + $0x38] sm:$0xff]
        %v270 = vld [vmem:[%s1 + $0x40] sm:$0xff]
        %v271 = vld [vmem:[%s1 + $0x48] sm:$0xff]
        %v272 = vld [vmem:[%s1 + $0x50] sm:$0xff]
        %v273 = vld [vmem:[%s1 + $0x58] sm:$0xff]
        %v274 = vld [vmem:[%s1 + $0x60] sm:$0xff]
        %v275 = vld [vmem:[%s1 + $0x68] sm:$0xff]
        %v276 = vld [vmem:[%s1 + $0x70] sm:$0xff]
        %v277 = vld [vmem:[%s1 + $0x78] sm:$0xff]
        %v278 = vld [vmem:[%s1 + $0x80] sm:$0xff]
        %v279 = vld [vmem:[%s1 + $0x88] sm:$0xff]
        %v280 = vld [vmem:[%s1 + $0x90] sm:$0xff]
        %v281 = vld [vmem:[%s1 + $0x98] sm:$0xff]
        %v282 = vld [vmem:[%s1 + $0xa0] sm:$0xff]
        %v283 = vld [vmem:[%s1 + $0xa8] sm:$0xff]
        %v284 = vld [vmem:[%s1 + $0xb0] sm:$0xff]
        %v285 = vld [vmem:[%s1 + $0xb8] sm:$0xff]
        %v286 = vld [vmem:[%s1 + $0xc0] sm:$0xff]
        %v287 = vld [vmem:[%s1 + $0xc8] sm:$0xff]
        %v288 = vld [vmem:[%s1 + $0xd0] sm:$0xff]
        %v289 = vld [vmem:[%s1 + $0xd8] sm:$0xff]
        %v290 = vld [vmem:[%s1 + $0xe0] sm:$0xff]
        %v291 = vld [vmem:[%s1 + $0xe8] sm:$0xff]
        %v292 = vld [vmem:[%s1 + $0xf0] sm:$0xff]
        %v293 = vld [vmem:[%s1 + $0xf8] sm:$0xff]
        %v294 = vld [vmem:[%s1 + $0x100] sm:$0xff]
        %v295 = vld [vmem:[%s1 + $0x108] sm:$0xff]
        %v296 = vld [vmem:[%s1 + $0x110] sm:$0xff]
        %v297 = vld [vmem:[%s1 + $0x118] sm:$0xff]
        %v298 = vld [vmem:[%s1 + $0x120] sm:$0xff]
        %v299 = vld [vmem:[%s1 + $0x128] sm:$0xff]
        %v300 = vld [vmem:[%s1 + $0x130] sm:$0xff]
        %v301 = vld [vmem:[%s1 + $0x138] sm:$0xff]
        %v302 = vld [vmem:[%s1 + $0x140] sm:$0xff]
        %v303 = vld [vmem:[%s1 + $0x148] sm:$0xff]
        %v304 = vld [vmem:[%s1 + $0x150] sm:$0xff]
        %v305 = vld [vmem:[%s1 + $0x158] sm:$0xff]
        %v306 = vld [vmem:[%s1 + $0x160] sm:$0xff]
        %v307 = vld [vmem:[%s1 + $0x168] sm:$0xff]
        %v308 = vld [vmem:[%s1 + $0x170] sm:$0xff]
        %v309 = vld [vmem:[%s1 + $0x178] sm:$0xff]
        %v310 = vld [vmem:[%s2] sm:$0x7]
        %v312 = vlaneseq
        %v313 = vshrl.u32 %v312, 7
        %v314 = vsub.s32 0, %v313
        %v315 = vrot.slane %v310, %v314
        %v316 = vlaneseq
        %v317 = vshrl.u32 %v316, 7
        %v318 = vsub.s32 1, %v317
        %v319 = vrot.slane %v310, %v318
        %v320 = vlaneseq
        %v321 = vshrl.u32 %v320, 7
        %v322 = vsub.s32 2, %v321
        %v323 = vrot.slane %v310, %v322
        %327 = vmatprep.subr.mxu0 %v263
        %328 = vmatpush1.msra.mxu0 %v262
        %329 = vmatprep.subr.mxu0 %v266
        %330 = vmatpush1.msra.mxu0 %v265
        %331 = vmatprep.subr.mxu0 %v269
        %332 = vmatpush1.msra.mxu0 %v268
        %333 = vmatprep.subr.mxu0 %v272
        %334 = vmatpush1.msra.mxu0 %v271
        %335 = vmatprep.subr.mxu0 %v275
        %336 = vmatpush1.msra.mxu0 %v274
        %337 = vmatprep.subr.mxu0 %v278
        %338 = vmatpush1.msra.mxu0 %v277
        %339 = vmatprep.subr.mxu0 %v281
        %340 = vmatpush1.msra.mxu0 %v280
        %341 = vmatprep.subr.mxu0 %v284
        %342 = vmatpush1.msra.mxu0 %v283
        %343 = vmatprep.subr.mxu0 %v287
        %344 = vmatpush1.msra.mxu0 %v286
        %345 = vmatprep.subr.mxu0 %v290
        %346 = vmatpush1.msra.mxu0 %v289
        %347 = vmatprep.subr.mxu0 %v293
        %348 = vmatpush1.msra.mxu0 %v292
        %349 = vmatprep.subr.mxu0 %v296
        %350 = vmatpush1.msra.mxu0 %v295
        %351 = vmatprep.subr.mxu0 %v299
        %352 = vmatpush1.msra.mxu0 %v298
        %353 = vmatprep.subr.mxu0 %v302
        %354 = vmatpush1.msra.mxu0 %v301
        %355 = vmatprep.subr.mxu0 %v305
        %356 = vmatpush1.msra.mxu0 %v304
        %357 = vmatprep.subr.mxu0 %v308
        %358 = vmatpush1.msra.mxu0 %v307
        %359 = vmatprep.subr.mxu0 0.0
        %360 = vmatpush1.msra.mxu0 0.0
        %361 = vmatprep.subr.mxu0 0.0
        %362 = vmatpush1.msra.mxu0 0.0
        %363 = vmatprep.subr.mxu0 0.0
        %364 = vmatpush1.msra.mxu0 0.0
        %365 = vmatprep.subr.mxu0 0.0
        %366 = vmatpush1.msra.mxu0 0.0
        %367 = vmatprep.subr.mxu0 0.0
        %368 = vmatpush1.msra.mxu0 0.0
        %369 = vmatprep.subr.mxu0 0.0
        %370 = vmatpush1.msra.mxu0 0.0
        %371 = vmatprep.subr.mxu0 0.0
        %372 = vmatpush1.msra.mxu0 0.0
        %373 = vmatprep.subr.mxu0 0.0
        %374 = vmatpush1.msra.mxu0 0.0
        %375 = vmatprep.subr.mxu0 0.0
        %376 = vmatpush1.msra.mxu0 0.0
        %377 = vmatprep.subr.mxu0 0.0
        %378 = vmatpush1.msra.mxu0 0.0
        %379 = vmatprep.subr.mxu0 0.0
        %380 = vmatpush1.msra.mxu0 0.0
        %381 = vmatprep.subr.mxu0 0.0
        %382 = vmatpush1.msra.mxu0 0.0
        %383 = vmatprep.subr.mxu0 0.0
        %384 = vmatpush1.msra.mxu0 0.0
        %385 = vmatprep.subr.mxu0 0.0
        %386 = vmatpush1.msra.mxu0 0.0
        %387 = vmatprep.subr.mxu0 0.0
        %388 = vmatpush1.msra.mxu0 0.0
        %389 = vmatprep.subr.mxu0 0.0
        %390 = vmatpush1.msra.mxu0 0.0
        %391 = vmatprep.mubr.f32.mxu0 0.0
        %392 = vmatmul.mubr.f32.gmra.mrb[0].mxu0 %v246
        %v393 = vpop.f32.mrb[0].mxu0
        %v394 = vadd.f32 %v315, %v393
        %v395 = vpop.f32.mrb[0].mxu0
        %v396 = vadd.f32 %v319, %v395
        %397 = vmatprep.mubr.f32.mxu0 0.0
        %398 = vmatmul.mubr.f32.gmra.mrb[0].mxu0 %v247
        %v399 = vpop.f32.mrb[0].mxu0
        %v400 = vadd.f32 %v315, %v399
        %v401 = vpop.f32.mrb[0].mxu0
        %v402 = vadd.f32 %v319, %v401
        %403 = vmatprep.mubr.f32.mxu0 0.0
        %404 = vmatmul.mubr.f32.gmra.mrb[0].mxu0 %v248
        %v405 = vpop.f32.mrb[0].mxu0
        %v406 = vadd.f32 %v315, %v405
        %v407 = vpop.f32.mrb[0].mxu0
        %v408 = vadd.f32 %v319, %v407
        %409 = vmatprep.mubr.f32.mxu0 0.0
        %410 = vmatmul.mubr.f32.gmra.mrb[0].mxu0 %v249
        %v411 = vpop.f32.mrb[0].mxu0
        %v412 = vadd.f32 %v315, %v411
        %v413 = vpop.f32.mrb[0].mxu0
        %v414 = vadd.f32 %v319, %v413
        %415 = vmatprep.mubr.f32.mxu0 0.0
        %416 = vmatmul.mubr.f32.gmra.mrb[0].mxu0 %v250
        %v417 = vpop.f32.mrb[0].mxu0
        %v418 = vadd.f32 %v315, %v417
        %v419 = vpop.f32.mrb[0].mxu0
        %v420 = vadd.f32 %v319, %v419
        %421 = vmatprep.mubr.f32.mxu0 0.0
        %422 = vmatmul.mubr.f32.gmra.mrb[0].mxu0 %v251
        %v423 = vpop.f32.mrb[0].mxu0
        %v424 = vadd.f32 %v315, %v423
        %v425 = vpop.f32.mrb[0].mxu0
        %v426 = vadd.f32 %v319, %v425
        %427 = vmatprep.mubr.f32.mxu0 0.0
        %428 = vmatmul.mubr.f32.gmra.mrb[0].mxu0 %v252
        %v429 = vpop.f32.mrb[0].mxu0
        %v430 = vadd.f32 %v315, %v429
        %v431 = vpop.f32.mrb[0].mxu0
        %v432 = vadd.f32 %v319, %v431
        %433 = vmatprep.mubr.f32.mxu0 0.0
        %434 = vmatmul.mubr.f32.gmra.mrb[0].mxu0 %v253
        %v435 = vpop.f32.mrb[0].mxu0
        %v436 = vadd.f32 %v315, %v435
        %v437 = vpop.f32.mrb[0].mxu0
        %v438 = vadd.f32 %v319, %v437
        %439 = vmatprep.mubr.f32.mxu0 0.0
        %440 = vmatmul.mubr.f32.gmra.mrb[0].mxu0 %v254
        %v441 = vpop.f32.mrb[0].mxu0
        %v442 = vadd.f32 %v315, %v441
        %v443 = vpop.f32.mrb[0].mxu0
        %v444 = vadd.f32 %v319, %v443
        %445 = vmatprep.mubr.f32.mxu0 0.0
        %446 = vmatmul.mubr.f32.gmra.mrb[0].mxu0 %v255
        %v447 = vpop.f32.mrb[0].mxu0
        %v448 = vadd.f32 %v315, %v447
        %v449 = vpop.f32.mrb[0].mxu0
        %v450 = vadd.f32 %v319, %v449
        %451 = vmatprep.mubr.f32.mxu0 0.0
        %452 = vmatmul.mubr.f32.gmra.mrb[0].mxu0 %v256
        %v453 = vpop.f32.mrb[0].mxu0
        %v454 = vadd.f32 %v315, %v453
        %v455 = vpop.f32.mrb[0].mxu0
        %v456 = vadd.f32 %v319, %v455
        %457 = vmatprep.mubr.f32.mxu0 0.0
        %458 = vmatmul.mubr.f32.gmra.mrb[0].mxu0 %v257
        %v459 = vpop.f32.mrb[0].mxu0
        %v460 = vadd.f32 %v315, %v459
        %v461 = vpop.f32.mrb[0].mxu0
        %v462 = vadd.f32 %v319, %v461
        %463 = vmatprep.mubr.f32.mxu0 0.0
        %464 = vmatmul.mubr.f32.gmra.mrb[0].mxu0 %v258
        %v465 = vpop.f32.mrb[0].mxu0
        %v466 = vadd.f32 %v315, %v465
        %v467 = vpop.f32.mrb[0].mxu0
        %v468 = vadd.f32 %v319, %v467
        %469 = vmatprep.mubr.f32.mxu0 0.0
        %470 = vmatmul.mubr.f32.gmra.mrb[0].mxu0 %v259
        %v471 = vpop.f32.mrb[0].mxu0
        %v472 = vadd.f32 %v315, %v471
        %v473 = vpop.f32.mrb[0].mxu0
        %v474 = vadd.f32 %v319, %v473
        %475 = vmatprep.mubr.f32.mxu0 0.0
        %476 = vmatmul.mubr.f32.gmra.mrb[0].mxu0 %v260
        %v477 = vpop.f32.mrb[0].mxu0
        %v478 = vadd.f32 %v315, %v477
        %v479 = vpop.f32.mrb[0].mxu0
        %v480 = vadd.f32 %v319, %v479
        %481 = vmatprep.mubr.f32.mxu0 0.0
        %482 = vmatmul.mubr.f32.gmra.mrb[0].mxu0 %v261
        %v483 = vpop.f32.mrb[0].mxu0
        %v484 = vadd.f32 %v315, %v483
        %v485 = vpop.f32.mrb[0].mxu0
        %v486 = vadd.f32 %v319, %v485
        %487 = vdwg.mxu0
        %488 = vmatprep.subr.mxu0 0.0
        %489 = vmatpush1.msra.mxu0 %v264
        %490 = vmatprep.subr.mxu0 0.0
        %491 = vmatpush1.msra.mxu0 %v267
        %492 = vmatprep.subr.mxu0 0.0
        %493 = vmatpush1.msra.mxu0 %v270
        %494 = vmatprep.subr.mxu0 0.0
        %495 = vmatpush1.msra.mxu0 %v273
        %496 = vmatprep.subr.mxu0 0.0
        %497 = vmatpush1.msra.mxu0 %v276
        %498 = vmatprep.subr.mxu0 0.0
        %499 = vmatpush1.msra.mxu0 %v279
        %500 = vmatprep.subr.mxu0 0.0
        %501 = vmatpush1.msra.mxu0 %v282
        %502 = vmatprep.subr.mxu0 0.0
        %503 = vmatpush1.msra.mxu0 %v285
        %504 = vmatprep.subr.mxu0 0.0
        %505 = vmatpush1.msra.mxu0 %v288
        %506 = vmatprep.subr.mxu0 0.0
        %507 = vmatpush1.msra.mxu0 %v291
        %508 = vmatprep.subr.mxu0 0.0
        %509 = vmatpush1.msra.mxu0 %v294
        %510 = vmatprep.subr.mxu0 0.0
        %511 = vmatpush1.msra.mxu0 %v297
        %512 = vmatprep.subr.mxu0 0.0
        %513 = vmatpush1.msra.mxu0 %v300
        %514 = vmatprep.subr.mxu0 0.0
        %515 = vmatpush1.msra.mxu0 %v303
        %516 = vmatprep.subr.mxu0 0.0
        %517 = vmatpush1.msra.mxu0 %v306
        %518 = vmatprep.subr.mxu0 0.0
        %519 = vmatpush1.msra.mxu0 %v309
        %520 = vmatprep.subr.mxu0 0.0
        %521 = vmatpush1.msra.mxu0 0.0
        %522 = vmatprep.subr.mxu0 0.0
        %523 = vmatpush1.msra.mxu0 0.0
        %524 = vmatprep.subr.mxu0 0.0
        %525 = vmatpush1.msra.mxu0 0.0
        %526 = vmatprep.subr.mxu0 0.0
        %527 = vmatpush1.msra.mxu0 0.0
        %528 = vmatprep.subr.mxu0 0.0
        %529 = vmatpush1.msra.mxu0 0.0
        %530 = vmatprep.subr.mxu0 0.0
        %531 = vmatpush1.msra.mxu0 0.0
        %532 = vmatprep.subr.mxu0 0.0
        %533 = vmatpush1.msra.mxu0 0.0
        %534 = vmatprep.subr.mxu0 0.0
        %535 = vmatpush1.msra.mxu0 0.0
        %536 = vmatprep.subr.mxu0 0.0
        %537 = vmatpush1.msra.mxu0 0.0
        %538 = vmatprep.subr.mxu0 0.0
        %539 = vmatpush1.msra.mxu0 0.0
        %540 = vmatprep.subr.mxu0 0.0
        %541 = vmatpush1.msra.mxu0 0.0
        %542 = vmatprep.subr.mxu0 0.0
        %543 = vmatpush1.msra.mxu0 0.0
        %544 = vmatprep.subr.mxu0 0.0
        %545 = vmatpush1.msra.mxu0 0.0
        %546 = vmatprep.subr.mxu0 0.0
        %547 = vmatpush1.msra.mxu0 0.0
        %548 = vmatprep.subr.mxu0 0.0
        %549 = vmatpush1.msra.mxu0 0.0
        %550 = vmatprep.subr.mxu0 0.0
        %551 = vmatpush1.msra.mxu0 0.0
        %552 = vmatprep.mubr.f32.mxu0 0.0
        %553 = vmatmul.mubr.f32.gmra.mrb[0].mxu0 %v246
        %v554 = vpop.f32.mrb[0].mxu0
        %v555 = vadd.f32 %v323, %v554
        %v556 = vpop.f32.mrb[0].mxu0
        %557 = vmatprep.mubr.f32.mxu0 0.0
        %558 = vmatmul.mubr.f32.gmra.mrb[0].mxu0 %v247
        %v559 = vpop.f32.mrb[0].mxu0
        %v560 = vadd.f32 %v323, %v559
        %v561 = vpop.f32.mrb[0].mxu0
        %562 = vmatprep.mubr.f32.mxu0 0.0
        %563 = vmatmul.mubr.f32.gmra.mrb[0].mxu0 %v248
        %v564 = vpop.f32.mrb[0].mxu0
        %v565 = vadd.f32 %v323, %v564
        %v566 = vpop.f32.mrb[0].mxu0
        %567 = vmatprep.mubr.f32.mxu0 0.0
        %568 = vmatmul.mubr.f32.gmra.mrb[0].mxu0 %v249
        %v569 = vpop.f32.mrb[0].mxu0
        %v570 = vadd.f32 %v323, %v569
        %v571 = vpop.f32.mrb[0].mxu0
        %572 = vmatprep.mubr.f32.mxu0 0.0
        %573 = vmatmul.mubr.f32.gmra.mrb[0].mxu0 %v250
        %v574 = vpop.f32.mrb[0].mxu0
        %v575 = vadd.f32 %v323, %v574
        %v576 = vpop.f32.mrb[0].mxu0
        %577 = vmatprep.mubr.f32.mxu0 0.0
        %578 = vmatmul.mubr.f32.gmra.mrb[0].mxu0 %v251
        %v579 = vpop.f32.mrb[0].mxu0
        %v580 = vadd.f32 %v323, %v579
        %v581 = vpop.f32.mrb[0].mxu0
        %582 = vmatprep.mubr.f32.mxu0 0.0
        %583 = vmatmul.mubr.f32.gmra.mrb[0].mxu0 %v252
        %v584 = vpop.f32.mrb[0].mxu0
        %v585 = vadd.f32 %v323, %v584
        %v586 = vpop.f32.mrb[0].mxu0
        %587 = vmatprep.mubr.f32.mxu0 0.0
        %588 = vmatmul.mubr.f32.gmra.mrb[0].mxu0 %v253
        %v589 = vpop.f32.mrb[0].mxu0
        %v590 = vadd.f32 %v323, %v589
        %v591 = vpop.f32.mrb[0].mxu0
        %592 = vmatprep.mubr.f32.mxu0 0.0
        %593 = vmatmul.mubr.f32.gmra.mrb[0].mxu0 %v254
        %v594 = vpop.f32.mrb[0].mxu0
        %v595 = vadd.f32 %v323, %v594
        %v596 = vpop.f32.mrb[0].mxu0
        %597 = vmatprep.mubr.f32.mxu0 0.0
        %598 = vmatmul.mubr.f32.gmra.mrb[0].mxu0 %v255
        %v599 = vpop.f32.mrb[0].mxu0
        %v600 = vadd.f32 %v323, %v599
        %v601 = vpop.f32.mrb[0].mxu0
        %602 = vmatprep.mubr.f32.mxu0 0.0
        %603 = vmatmul.mubr.f32.gmra.mrb[0].mxu0 %v256
        %v604 = vpop.f32.mrb[0].mxu0
        %v605 = vadd.f32 %v323, %v604
        %v606 = vpop.f32.mrb[0].mxu0
        %607 = vmatprep.mubr.f32.mxu0 0.0
        %608 = vmatmul.mubr.f32.gmra.mrb[0].mxu0 %v257
        %v609 = vpop.f32.mrb[0].mxu0
        %v610 = vadd.f32 %v323, %v609
        %v611 = vpop.f32.mrb[0].mxu0
        %612 = vmatprep.mubr.f32.mxu0 0.0
        %613 = vmatmul.mubr.f32.gmra.mrb[0].mxu0 %v258
        %v614 = vpop.f32.mrb[0].mxu0
        %v615 = vadd.f32 %v323, %v614
        %v616 = vpop.f32.mrb[0].mxu0
        %617 = vmatprep.mubr.f32.mxu0 0.0
        %618 = vmatmul.mubr.f32.gmra.mrb[0].mxu0 %v259
        %v619 = vpop.f32.mrb[0].mxu0
        %v620 = vadd.f32 %v323, %v619
        %v621 = vpop.f32.mrb[0].mxu0
        %622 = vmatprep.mubr.f32.mxu0 0.0
        %623 = vmatmul.mubr.f32.gmra.mrb[0].mxu0 %v260
        %v624 = vpop.f32.mrb[0].mxu0
        %v625 = vadd.f32 %v323, %v624
        %v626 = vpop.f32.mrb[0].mxu0
        %627 = vmatprep.mubr.f32.mxu0 0.0
        %628 = vmatmul.mubr.f32.gmra.mrb[0].mxu0 %v261
        %v629 = vpop.f32.mrb[0].mxu0
        %v630 = vadd.f32 %v323, %v629
        %v631 = vpop.f32.mrb[0].mxu0
        %632 = vdwg.mxu0
        %v633 = vmul.f32 %v394, 0.5
        %v634 = vmul.f32 %v396, 0.5
        %v635 = vmul.f32 %v555, 0.5
        %v636 = vmul.f32 %v400, 0.5
        %v637 = vmul.f32 %v402, 0.5
        %v638 = vmul.f32 %v560, 0.5
        %v639 = vmul.f32 %v406, 0.5
        %v640 = vmul.f32 %v408, 0.5
        %v641 = vmul.f32 %v565, 0.5
        %v642 = vmul.f32 %v412, 0.5
        %v643 = vmul.f32 %v414, 0.5
        %v644 = vmul.f32 %v570, 0.5
        %v645 = vmul.f32 %v418, 0.5
        %v646 = vmul.f32 %v420, 0.5
        %v647 = vmul.f32 %v575, 0.5
        %v648 = vmul.f32 %v424, 0.5
        %v649 = vmul.f32 %v426, 0.5
        %v650 = vmul.f32 %v580, 0.5
        %v651 = vmul.f32 %v430, 0.5
        %v652 = vmul.f32 %v432, 0.5
        %v653 = vmul.f32 %v585, 0.5
        %v654 = vmul.f32 %v436, 0.5
        %v655 = vmul.f32 %v438, 0.5
        %v656 = vmul.f32 %v590, 0.5
        %v657 = vmul.f32 %v442, 0.5
        %v658 = vmul.f32 %v444, 0.5
        %v659 = vmul.f32 %v595, 0.5
        %v660 = vmul.f32 %v448, 0.5
        %v661 = vmul.f32 %v450, 0.5
        %v662 = vmul.f32 %v600, 0.5
        %v663 = vmul.f32 %v454, 0.5
        %v664 = vmul.f32 %v456, 0.5
        %v665 = vmul.f32 %v605, 0.5
        %v666 = vmul.f32 %v460, 0.5
        %v667 = vmul.f32 %v462, 0.5
        %v668 = vmul.f32 %v610, 0.5
        %v669 = vmul.f32 %v466, 0.5
        %v670 = vmul.f32 %v468, 0.5
        %v671 = vmul.f32 %v615, 0.5
        %v672 = vmul.f32 %v472, 0.5
        %v673 = vmul.f32 %v474, 0.5
        %v674 = vmul.f32 %v620, 0.5
        %v675 = vmul.f32 %v478, 0.5
        %v676 = vmul.f32 %v480, 0.5
        %v677 = vmul.f32 %v625, 0.5
        %v678 = vmul.f32 %v484, 0.5
        %v679 = vmul.f32 %v486, 0.5
        %v680 = vmul.f32 %v630, 0.5
        %v681 = vmul.f32 %v394, 0.70710677
        %v682 = vmul.f32 %v396, 0.70710677
        %v683 = vmul.f32 %v555, 0.70710677
        %v684 = vmul.f32 %v400, 0.70710677
        %v685 = vmul.f32 %v402, 0.70710677
        %v686 = vmul.f32 %v560, 0.70710677
        %v687 = vmul.f32 %v406, 0.70710677
        %v688 = vmul.f32 %v408, 0.70710677
        %v689 = vmul.f32 %v565, 0.70710677
        %v690 = vmul.f32 %v412, 0.70710677
        %v691 = vmul.f32 %v414, 0.70710677
        %v692 = vmul.f32 %v570, 0.70710677
        %v693 = vmul.f32 %v418, 0.70710677
        %v694 = vmul.f32 %v420, 0.70710677
        %v695 = vmul.f32 %v575, 0.70710677
        %v696 = vmul.f32 %v424, 0.70710677
        %v697 = vmul.f32 %v426, 0.70710677
        %v698 = vmul.f32 %v580, 0.70710677
        %v699 = vmul.f32 %v430, 0.70710677
        %v700 = vmul.f32 %v432, 0.70710677
        %v701 = vmul.f32 %v585, 0.70710677
        %v702 = vmul.f32 %v436, 0.70710677
        %v703 = vmul.f32 %v438, 0.70710677
        %v704 = vmul.f32 %v590, 0.70710677
        %v705 = vmul.f32 %v442, 0.70710677
        %v706 = vmul.f32 %v444, 0.70710677
        %v707 = vmul.f32 %v595, 0.70710677
        %v708 = vmul.f32 %v448, 0.70710677
        %v709 = vmul.f32 %v450, 0.70710677
        %v710 = vmul.f32 %v600, 0.70710677
        %v711 = vmul.f32 %v454, 0.70710677
        %v712 = vmul.f32 %v456, 0.70710677
        %v713 = vmul.f32 %v605, 0.70710677
        %v714 = vmul.f32 %v460, 0.70710677
        %v715 = vmul.f32 %v462, 0.70710677
        %v716 = vmul.f32 %v610, 0.70710677
        %v717 = vmul.f32 %v466, 0.70710677
        %v718 = vmul.f32 %v468, 0.70710677
        %v719 = vmul.f32 %v615, 0.70710677
        %v720 = vmul.f32 %v472, 0.70710677
        %v721 = vmul.f32 %v474, 0.70710677
        %v722 = vmul.f32 %v620, 0.70710677
        %v723 = vmul.f32 %v478, 0.70710677
        %v724 = vmul.f32 %v480, 0.70710677
        %v725 = vmul.f32 %v625, 0.70710677
        %v726 = vmul.f32 %v484, 0.70710677
        %v727 = vmul.f32 %v486, 0.70710677
        %v728 = vmul.f32 %v630, 0.70710677
        %v729 = verf.f32.pop %v681
        %v730 = verf.f32.pop %v682
        %v731 = verf.f32.pop %v683
        %v732 = verf.f32.pop %v684
        %v733 = verf.f32.pop %v685
        %v734 = verf.f32.pop %v686
        %v735 = verf.f32.pop %v687
        %v736 = verf.f32.pop %v688
        %v737 = verf.f32.pop %v689
        %v738 = verf.f32.pop %v690
        %v739 = verf.f32.pop %v691
        %v740 = verf.f32.pop %v692
        %v741 = verf.f32.pop %v693
        %v742 = verf.f32.pop %v694
        %v743 = verf.f32.pop %v695
        %v744 = verf.f32.pop %v696
        %v745 = verf.f32.pop %v697
        %v746 = verf.f32.pop %v698
        %v747 = verf.f32.pop %v699
        %v748 = verf.f32.pop %v700
        %v749 = verf.f32.pop %v701
        %v750 = verf.f32.pop %v702
        %v751 = verf.f32.pop %v703
        %v752 = verf.f32.pop %v704
        %v753 = verf.f32.pop %v705
        %v754 = verf.f32.pop %v706
        %v755 = verf.f32.pop %v707
        %v756 = verf.f32.pop %v708
        %v757 = verf.f32.pop %v709
        %v758 = verf.f32.pop %v710
        %v759 = verf.f32.pop %v711
        %v760 = verf.f32.pop %v712
        %v761 = verf.f32.pop %v713
        %v762 = verf.f32.pop %v714
        %v763 = verf.f32.pop %v715
        %v764 = verf.f32.pop %v716
        %v765 = verf.f32.pop %v717
        %v766 = verf.f32.pop %v718
        %v767 = verf.f32.pop %v719
        %v768 = verf.f32.pop %v720
        %v769 = verf.f32.pop %v721
        %v770 = verf.f32.pop %v722
        %v771 = verf.f32.pop %v723
        %v772 = verf.f32.pop %v724
        %v773 = verf.f32.pop %v725
        %v774 = verf.f32.pop %v726
        %v775 = verf.f32.pop %v727
        %v776 = verf.f32.pop %v728
        %v777 = vadd.f32 %v729, 1.0
        %v778 = vadd.f32 %v730, 1.0
        %v779 = vadd.f32 %v731, 1.0
        %v780 = vadd.f32 %v732, 1.0
        %v781 = vadd.f32 %v733, 1.0
        %v782 = vadd.f32 %v734, 1.0
        %v783 = vadd.f32 %v735, 1.0
        %v784 = vadd.f32 %v736, 1.0
        %v785 = vadd.f32 %v737, 1.0
        %v786 = vadd.f32 %v738, 1.0
        %v787 = vadd.f32 %v739, 1.0
        %v788 = vadd.f32 %v740, 1.0
        %v789 = vadd.f32 %v741, 1.0
        %v790 = vadd.f32 %v742, 1.0
        %v791 = vadd.f32 %v743, 1.0
        %v792 = vadd.f32 %v744, 1.0
        %v793 = vadd.f32 %v745, 1.0
        %v794 = vadd.f32 %v746, 1.0
        %v795 = vadd.f32 %v747, 1.0
        %v796 = vadd.f32 %v748, 1.0
        %v797 = vadd.f32 %v749, 1.0
        %v798 = vadd.f32 %v750, 1.0
        %v799 = vadd.f32 %v751, 1.0
        %v800 = vadd.f32 %v752, 1.0
        %v801 = vadd.f32 %v753, 1.0
        %v802 = vadd.f32 %v754, 1.0
        %v803 = vadd.f32 %v755, 1.0
        %v804 = vadd.f32 %v756, 1.0
        %v805 = vadd.f32 %v757, 1.0
        %v806 = vadd.f32 %v758, 1.0
        %v807 = vadd.f32 %v759, 1.0
        %v808 = vadd.f32 %v760, 1.0
        %v809 = vadd.f32 %v761, 1.0
        %v810 = vadd.f32 %v762, 1.0
        %v811 = vadd.f32 %v763, 1.0
        %v812 = vadd.f32 %v764, 1.0
        %v813 = vadd.f32 %v765, 1.0
        %v814 = vadd.f32 %v766, 1.0
        %v815 = vadd.f32 %v767, 1.0
        %v816 = vadd.f32 %v768, 1.0
        %v817 = vadd.f32 %v769, 1.0
        %v818 = vadd.f32 %v770, 1.0
        %v819 = vadd.f32 %v771, 1.0
        %v820 = vadd.f32 %v772, 1.0
        %v821 = vadd.f32 %v773, 1.0
        %v822 = vadd.f32 %v774, 1.0
        %v823 = vadd.f32 %v775, 1.0
        %v824 = vadd.f32 %v776, 1.0
        %v825 = vmul.f32 %v633, %v777
        %v826 = vmul.f32 %v634, %v778
        %v827 = vmul.f32 %v635, %v779
        %v828 = vmul.f32 %v636, %v780
        %v829 = vmul.f32 %v637, %v781
        %v830 = vmul.f32 %v638, %v782
        %v831 = vmul.f32 %v639, %v783
        %v832 = vmul.f32 %v640, %v784
        %v833 = vmul.f32 %v641, %v785
        %v834 = vmul.f32 %v642, %v786
        %v835 = vmul.f32 %v643, %v787
        %v836 = vmul.f32 %v644, %v788
        %v837 = vmul.f32 %v645, %v789
        %v838 = vmul.f32 %v646, %v790
        %v839 = vmul.f32 %v647, %v791
        %v840 = vmul.f32 %v648, %v792
        %v841 = vmul.f32 %v649, %v793
        %v842 = vmul.f32 %v650, %v794
        %v843 = vmul.f32 %v651, %v795
        %v844 = vmul.f32 %v652, %v796
        %v845 = vmul.f32 %v653, %v797
        %v846 = vmul.f32 %v654, %v798
        %v847 = vmul.f32 %v655, %v799
        %v848 = vmul.f32 %v656, %v800
        %v849 = vmul.f32 %v657, %v801
        %v850 = vmul.f32 %v658, %v802
        %v851 = vmul.f32 %v659, %v803
        %v852 = vmul.f32 %v660, %v804
        %v853 = vmul.f32 %v661, %v805
        %v854 = vmul.f32 %v662, %v806
        %v855 = vmul.f32 %v663, %v807
        %v856 = vmul.f32 %v664, %v808
        %v857 = vmul.f32 %v665, %v809
        %v858 = vmul.f32 %v666, %v810
        %v859 = vmul.f32 %v667, %v811
        %v860 = vmul.f32 %v668, %v812
        %v861 = vmul.f32 %v669, %v813
        %v862 = vmul.f32 %v670, %v814
        %v863 = vmul.f32 %v671, %v815
        %v864 = vmul.f32 %v672, %v816
        %v865 = vmul.f32 %v673, %v817
        %v866 = vmul.f32 %v674, %v818
        %v867 = vmul.f32 %v675, %v819
        %v868 = vmul.f32 %v676, %v820
        %v869 = vmul.f32 %v677, %v821
        %v870 = vmul.f32 %v678, %v822
        %v871 = vmul.f32 %v679, %v823
        %v872 = vmul.f32 %v680, %v824
        %v873 = vld [vmem:[%s3] sm:$0xff]
        %v874 = vld [vmem:[%s3 + $0x8] sm:$0xff]
        %v875 = vld [vmem:[%s3 + $0x10] sm:$0xff]
        %v876 = vld [vmem:[%s3 + $0x18] sm:$0xff]
        %v877 = vld [vmem:[%s3 + $0x20] sm:$0xff]
        %v878 = vld [vmem:[%s3 + $0x28] sm:$0xff]
        %v879 = vld [vmem:[%s3 + $0x30] sm:$0xff]
        %v880 = vld [vmem:[%s3 + $0x38] sm:$0xff]
        %v881 = vld [vmem:[%s3 + $0x40] sm:$0xff]
        %v882 = vld [vmem:[%s3 + $0x48] sm:$0xff]
        %v883 = vld [vmem:[%s3 + $0x50] sm:$0xff]
        %v884 = vld [vmem:[%s3 + $0x58] sm:$0xff]
        %v885 = vld [vmem:[%s3 + $0x60] sm:$0xff]
        %v886 = vld [vmem:[%s3 + $0x68] sm:$0xff]
        %v887 = vld [vmem:[%s3 + $0x70] sm:$0xff]
        %v888 = vld [vmem:[%s3 + $0x78] sm:$0xff]
        %v889 = vld [vmem:[%s3 + $0x80] sm:$0xff]
        %v890 = vld [vmem:[%s3 + $0x88] sm:$0xff]
        %v891 = vld [vmem:[%s3 + $0x90] sm:$0xff]
        %v892 = vld [vmem:[%s3 + $0x98] sm:$0xff]
        %v893 = vld [vmem:[%s3 + $0xa0] sm:$0xff]
        %v894 = vld [vmem:[%s3 + $0xa8] sm:$0xff]
        %v895 = vld [vmem:[%s3 + $0xb0] sm:$0xff]
        %v896 = vld [vmem:[%s3 + $0xb8] sm:$0xff]
        %v897 = vld [vmem:[%s3 + $0xc0] sm:$0xff]
        %v898 = vld [vmem:[%s3 + $0xc8] sm:$0xff]
        %v899 = vld [vmem:[%s3 + $0xd0] sm:$0xff]
        %v900 = vld [vmem:[%s3 + $0xd8] sm:$0xff]
        %v901 = vld [vmem:[%s3 + $0xe0] sm:$0xff]
        %v902 = vld [vmem:[%s3 + $0xe8] sm:$0xff]
        %v903 = vld [vmem:[%s3 + $0xf0] sm:$0xff]
        %v904 = vld [vmem:[%s3 + $0xf8] sm:$0xff]
        %v905 = vld [vmem:[%s3 + $0x100] sm:$0xff]
        %v906 = vld [vmem:[%s3 + $0x108] sm:$0xff]
        %v907 = vld [vmem:[%s3 + $0x110] sm:$0xff]
        %v908 = vld [vmem:[%s3 + $0x118] sm:$0xff]
        %v909 = vld [vmem:[%s3 + $0x120] sm:$0xff]
        %v910 = vld [vmem:[%s3 + $0x128] sm:$0xff]
        %v911 = vld [vmem:[%s3 + $0x130] sm:$0xff]
        %v912 = vld [vmem:[%s3 + $0x138] sm:$0xff]
        %v913 = vld [vmem:[%s3 + $0x140] sm:$0xff]
        %v914 = vld [vmem:[%s3 + $0x148] sm:$0xff]
        %v915 = vld [vmem:[%s3 + $0x150] sm:$0xff]
        %v916 = vld [vmem:[%s3 + $0x158] sm:$0xff]
        %v917 = vld [vmem:[%s3 + $0x160] sm:$0xff]
        %v918 = vld [vmem:[%s3 + $0x168] sm:$0xff]
        %v919 = vld [vmem:[%s3 + $0x170] sm:$0xff]
        %v920 = vld [vmem:[%s3 + $0x178] sm:$0xff]
        %v921 = vld [vmem:[%s4] sm:$0x1]
        %v923 = vlaneseq
        %v924 = vshrl.u32 %v923, 7
        %v925 = vsub.s32 0, %v924
        %v926 = vrot.slane %v921, %v925
        %928 = vmatprep.subr.mxu0 0.0
        %929 = vmatpush1.msra.mxu0 %v873
        %930 = vmatprep.subr.mxu0 0.0
        %931 = vmatpush1.msra.mxu0 %v874
        %932 = vmatprep.subr.mxu0 0.0
        %933 = vmatpush1.msra.mxu0 %v875
        %934 = vmatprep.subr.mxu0 0.0
        %935 = vmatpush1.msra.mxu0 %v876
        %936 = vmatprep.subr.mxu0 0.0
        %937 = vmatpush1.msra.mxu0 %v877
        %938 = vmatprep.subr.mxu0 0.0
        %939 = vmatpush1.msra.mxu0 %v878
        %940 = vmatprep.subr.mxu0 0.0
        %941 = vmatpush1.msra.mxu0 %v879
        %942 = vmatprep.subr.mxu0 0.0
        %943 = vmatpush1.msra.mxu0 %v880
        %944 = vmatprep.subr.mxu0 0.0
        %945 = vmatpush1.msra.mxu0 %v881
        %946 = vmatprep.subr.mxu0 0.0
        %947 = vmatpush1.msra.mxu0 %v882
        %948 = vmatprep.subr.mxu0 0.0
        %949 = vmatpush1.msra.mxu0 %v883
        %950 = vmatprep.subr.mxu0 0.0
        %951 = vmatpush1.msra.mxu0 %v884
        %952 = vmatprep.subr.mxu0 0.0
        %953 = vmatpush1.msra.mxu0 %v885
        %954 = vmatprep.subr.mxu0 0.0
        %955 = vmatpush1.msra.mxu0 %v886
        %956 = vmatprep.subr.mxu0 0.0
        %957 = vmatpush1.msra.mxu0 %v887
        %958 = vmatprep.subr.mxu0 0.0
        %959 = vmatpush1.msra.mxu0 %v888
        %960 = vmatprep.subr.mxu0 0.0
        %961 = vmatpush1.msra.mxu0 %v889
        %962 = vmatprep.subr.mxu0 0.0
        %963 = vmatpush1.msra.mxu0 %v890
        %964 = vmatprep.subr.mxu0 0.0
        %965 = vmatpush1.msra.mxu0 %v891
        %966 = vmatprep.subr.mxu0 0.0
        %967 = vmatpush1.msra.mxu0 %v892
        %968 = vmatprep.subr.mxu0 0.0
        %969 = vmatpush1.msra.mxu0 %v893
        %970 = vmatprep.subr.mxu0 0.0
        %971 = vmatpush1.msra.mxu0 %v894
        %972 = vmatprep.subr.mxu0 0.0
        %973 = vmatpush1.msra.mxu0 %v895
        %974 = vmatprep.subr.mxu0 0.0
        %975 = vmatpush1.msra.mxu0 %v896
        %976 = vmatprep.subr.mxu0 0.0
        %977 = vmatpush1.msra.mxu0 %v897
        %978 = vmatprep.subr.mxu0 0.0
        %979 = vmatpush1.msra.mxu0 %v898
        %980 = vmatprep.subr.mxu0 0.0
        %981 = vmatpush1.msra.mxu0 %v899
        %982 = vmatprep.subr.mxu0 0.0
        %983 = vmatpush1.msra.mxu0 %v900
        %984 = vmatprep.subr.mxu0 0.0
        %985 = vmatpush1.msra.mxu0 %v901
        %986 = vmatprep.subr.mxu0 0.0
        %987 = vmatpush1.msra.mxu0 %v902
        %988 = vmatprep.subr.mxu0 0.0
        %989 = vmatpush1.msra.mxu0 %v903
        %990 = vmatprep.subr.mxu0 0.0
        %991 = vmatpush1.msra.mxu0 %v904
        %992 = vmatprep.mubr.f32.mxu0 %v826
        %993 = vmatmul.mubr.f32.gmra.mrb[0].mxu0 %v825
        %v994 = vpop.f32.mrb[0].mxu0
        %v995 = vadd.f32 %v926, %v994
        %v996 = vpop.f32.mrb[0].mxu0
        %997 = vmatprep.mubr.f32.mxu0 %v829
        %998 = vmatmul.mubr.f32.gmra.mrb[0].mxu0 %v828
        %v999 = vpop.f32.mrb[0].mxu0
        %v1000 = vadd.f32 %v926, %v999
        %v1001 = vpop.f32.mrb[0].mxu0
        %1002 = vmatprep.mubr.f32.mxu0 %v832
        %1003 = vmatmul.mubr.f32.gmra.mrb[0].mxu0 %v831
        %v1004 = vpop.f32.mrb[0].mxu0
        %v1005 = vadd.f32 %v926, %v1004
        %v1006 = vpop.f32.mrb[0].mxu0
        %1007 = vmatprep.mubr.f32.mxu0 %v835
        %1008 = vmatmul.mubr.f32.gmra.mrb[0].mxu0 %v834
        %v1009 = vpop.f32.mrb[0].mxu0
        %v1010 = vadd.f32 %v926, %v1009
        %v1011 = vpop.f32.mrb[0].mxu0
        %1012 = vmatprep.mubr.f32.mxu0 %v838
        %1013 = vmatmul.mubr.f32.gmra.mrb[0].mxu0 %v837
        %v1014 = vpop.f32.mrb[0].mxu0
        %v1015 = vadd.f32 %v926, %v1014
        %v1016 = vpop.f32.mrb[0].mxu0
        %1017 = vmatprep.mubr.f32.mxu0 %v841
        %1018 = vmatmul.mubr.f32.gmra.mrb[0].mxu0 %v840
        %v1019 = vpop.f32.mrb[0].mxu0
        %v1020 = vadd.f32 %v926, %v1019
        %v1021 = vpop.f32.mrb[0].mxu0
        %1022 = vmatprep.mubr.f32.mxu0 %v844
        %1023 = vmatmul.mubr.f32.gmra.mrb[0].mxu0 %v843
        %v1024 = vpop.f32.mrb[0].mxu0
        %v1025 = vadd.f32 %v926, %v1024
        %v1026 = vpop.f32.mrb[0].mxu0
        %1027 = vmatprep.mubr.f32.mxu0 %v847
        %1028 = vmatmul.mubr.f32.gmra.mrb[0].mxu0 %v846
        %v1029 = vpop.f32.mrb[0].mxu0
        %v1030 = vadd.f32 %v926, %v1029
        %v1031 = vpop.f32.mrb[0].mxu0
        %1032 = vmatprep.mubr.f32.mxu0 %v850
        %1033 = vmatmul.mubr.f32.gmra.mrb[0].mxu0 %v849
        %v1034 = vpop.f32.mrb[0].mxu0
        %v1035 = vadd.f32 %v926, %v1034
        %v1036 = vpop.f32.mrb[0].mxu0
        %1037 = vmatprep.mubr.f32.mxu0 %v853
        %1038 = vmatmul.mubr.f32.gmra.mrb[0].mxu0 %v852
        %v1039 = vpop.f32.mrb[0].mxu0
        %v1040 = vadd.f32 %v926, %v1039
        %v1041 = vpop.f32.mrb[0].mxu0
        %1042 = vmatprep.mubr.f32.mxu0 %v856
        %1043 = vmatmul.mubr.f32.gmra.mrb[0].mxu0 %v855
        %v1044 = vpop.f32.mrb[0].mxu0
        %v1045 = vadd.f32 %v926, %v1044
        %v1046 = vpop.f32.mrb[0].mxu0
        %1047 = vmatprep.mubr.f32.mxu0 %v859
        %1048 = vmatmul.mubr.f32.gmra.mrb[0].mxu0 %v858
        %v1049 = vpop.f32.mrb[0].mxu0
        %v1050 = vadd.f32 %v926, %v1049
        %v1051 = vpop.f32.mrb[0].mxu0
        %1052 = vmatprep.mubr.f32.mxu0 %v862
        %1053 = vmatmul.mubr.f32.gmra.mrb[0].mxu0 %v861
        %v1054 = vpop.f32.mrb[0].mxu0
        %v1055 = vadd.f32 %v926, %v1054
        %v1056 = vpop.f32.mrb[0].mxu0
        %1057 = vmatprep.mubr.f32.mxu0 %v865
        %1058 = vmatmul.mubr.f32.gmra.mrb[0].mxu0 %v864
        %v1059 = vpop.f32.mrb[0].mxu0
        %v1060 = vadd.f32 %v926, %v1059
        %v1061 = vpop.f32.mrb[0].mxu0
        %1062 = vmatprep.mubr.f32.mxu0 %v868
        %1063 = vmatmul.mubr.f32.gmra.mrb[0].mxu0 %v867
        %v1064 = vpop.f32.mrb[0].mxu0
        %v1065 = vadd.f32 %v926, %v1064
        %v1066 = vpop.f32.mrb[0].mxu0
        %1067 = vmatprep.mubr.f32.mxu0 %v871
        %1068 = vmatmul.mubr.f32.gmra.mrb[0].mxu0 %v870
        %v1069 = vpop.f32.mrb[0].mxu0
        %v1070 = vadd.f32 %v926, %v1069
        %v1071 = vpop.f32.mrb[0].mxu0
        %1072 = vdwg.mxu0
        %1073 = vmatprep.subr.mxu0 0.0
        %1074 = vmatpush1.msra.mxu0 %v905
        %1075 = vmatprep.subr.mxu0 0.0
        %1076 = vmatpush1.msra.mxu0 %v906
        %1077 = vmatprep.subr.mxu0 0.0
        %1078 = vmatpush1.msra.mxu0 %v907
        %1079 = vmatprep.subr.mxu0 0.0
        %1080 = vmatpush1.msra.mxu0 %v908
        %1081 = vmatprep.subr.mxu0 0.0
        %1082 = vmatpush1.msra.mxu0 %v909
        %1083 = vmatprep.subr.mxu0 0.0
        %1084 = vmatpush1.msra.mxu0 %v910
        %1085 = vmatprep.subr.mxu0 0.0
        %1086 = vmatpush1.msra.mxu0 %v911
        %1087 = vmatprep.subr.mxu0 0.0
        %1088 = vmatpush1.msra.mxu0 %v912
        %1089 = vmatprep.subr.mxu0 0.0
        %1090 = vmatpush1.msra.mxu0 %v913
        %1091 = vmatprep.subr.mxu0 0.0
        %1092 = vmatpush1.msra.mxu0 %v914
        %1093 = vmatprep.subr.mxu0 0.0
        %1094 = vmatpush1.msra.mxu0 %v915
        %1095 = vmatprep.subr.mxu0 0.0
        %1096 = vmatpush1.msra.mxu0 %v916
        %1097 = vmatprep.subr.mxu0 0.0
        %1098 = vmatpush1.msra.mxu0 %v917
        %1099 = vmatprep.subr.mxu0 0.0
        %1100 = vmatpush1.msra.mxu0 %v918
        %1101 = vmatprep.subr.mxu0 0.0
        %1102 = vmatpush1.msra.mxu0 %v919
        %1103 = vmatprep.subr.mxu0 0.0
        %1104 = vmatpush1.msra.mxu0 %v920
        %1105 = vmatprep.subr.mxu0 0.0
        %1106 = vmatpush1.msra.mxu0 0.0
        %1107 = vmatprep.subr.mxu0 0.0
        %1108 = vmatpush1.msra.mxu0 0.0
        %1109 = vmatprep.subr.mxu0 0.0
        %1110 = vmatpush1.msra.mxu0 0.0
        %1111 = vmatprep.subr.mxu0 0.0
        %1112 = vmatpush1.msra.mxu0 0.0
        %1113 = vmatprep.subr.mxu0 0.0
        %1114 = vmatpush1.msra.mxu0 0.0
        %1115 = vmatprep.subr.mxu0 0.0
        %1116 = vmatpush1.msra.mxu0 0.0
        %1117 = vmatprep.subr.mxu0 0.0
        %1118 = vmatpush1.msra.mxu0 0.0
        %1119 = vmatprep.subr.mxu0 0.0
        %1120 = vmatpush1.msra.mxu0 0.0
        %1121 = vmatprep.subr.mxu0 0.0
        %1122 = vmatpush1.msra.mxu0 0.0
        %1123 = vmatprep.subr.mxu0 0.0
        %1124 = vmatpush1.msra.mxu0 0.0
        %1125 = vmatprep.subr.mxu0 0.0
        %1126 = vmatpush1.msra.mxu0 0.0
        %1127 = vmatprep.subr.mxu0 0.0
        %1128 = vmatpush1.msra.mxu0 0.0
        %1129 = vmatprep.subr.mxu0 0.0
        %1130 = vmatpush1.msra.mxu0 0.0
        %1131 = vmatprep.subr.mxu0 0.0
        %1132 = vmatpush1.msra.mxu0 0.0
        %1133 = vmatprep.subr.mxu0 0.0
        %1134 = vmatpush1.msra.mxu0 0.0
        %1135 = vmatprep.subr.mxu0 0.0
        %1136 = vmatpush1.msra.mxu0 0.0
        %1137 = vmatprep.mubr.f32.mxu0 0.0
        %1138 = vmatmul.mubr.f32.gmra.mrb[0].mxu0 %v827
        %v1139 = vpop.f32.mrb[0].mxu0
        %v1140 = vadd.f32 %v995, %v1139
        %v1141 = vpop.f32.mrb[0].mxu0
        %1142 = vmatprep.mubr.f32.mxu0 0.0
        %1143 = vmatmul.mubr.f32.gmra.mrb[0].mxu0 %v830
        %v1144 = vpop.f32.mrb[0].mxu0
        %v1145 = vadd.f32 %v1000, %v1144
        %v1146 = vpop.f32.mrb[0].mxu0
        %1147 = vmatprep.mubr.f32.mxu0 0.0
        %1148 = vmatmul.mubr.f32.gmra.mrb[0].mxu0 %v833
        %v1149 = vpop.f32.mrb[0].mxu0
        %v1150 = vadd.f32 %v1005, %v1149
        %v1151 = vpop.f32.mrb[0].mxu0
        %1152 = vmatprep.mubr.f32.mxu0 0.0
        %1153 = vmatmul.mubr.f32.gmra.mrb[0].mxu0 %v836
        %v1154 = vpop.f32.mrb[0].mxu0
        %v1155 = vadd.f32 %v1010, %v1154
        %v1156 = vpop.f32.mrb[0].mxu0
        %1157 = vmatprep.mubr.f32.mxu0 0.0
        %1158 = vmatmul.mubr.f32.gmra.mrb[0].mxu0 %v839
        %v1159 = vpop.f32.mrb[0].mxu0
        %v1160 = vadd.f32 %v1015, %v1159
        %v1161 = vpop.f32.mrb[0].mxu0
        %1162 = vmatprep.mubr.f32.mxu0 0.0
        %1163 = vmatmul.mubr.f32.gmra.mrb[0].mxu0 %v842
        %v1164 = vpop.f32.mrb[0].mxu0
        %v1165 = vadd.f32 %v1020, %v1164
        %v1166 = vpop.f32.mrb[0].mxu0
        %1167 = vmatprep.mubr.f32.mxu0 0.0
        %1168 = vmatmul.mubr.f32.gmra.mrb[0].mxu0 %v845
        %v1169 = vpop.f32.mrb[0].mxu0
        %v1170 = vadd.f32 %v1025, %v1169
        %v1171 = vpop.f32.mrb[0].mxu0
        %1172 = vmatprep.mubr.f32.mxu0 0.0
        %1173 = vmatmul.mubr.f32.gmra.mrb[0].mxu0 %v848
        %v1174 = vpop.f32.mrb[0].mxu0
        %v1175 = vadd.f32 %v1030, %v1174
        %v1176 = vpop.f32.mrb[0].mxu0
        %1177 = vmatprep.mubr.f32.mxu0 0.0
        %1178 = vmatmul.mubr.f32.gmra.mrb[0].mxu0 %v851
        %v1179 = vpop.f32.mrb[0].mxu0
        %v1180 = vadd.f32 %v1035, %v1179
        %v1181 = vpop.f32.mrb[0].mxu0
        %1182 = vmatprep.mubr.f32.mxu0 0.0
        %1183 = vmatmul.mubr.f32.gmra.mrb[0].mxu0 %v854
        %v1184 = vpop.f32.mrb[0].mxu0
        %v1185 = vadd.f32 %v1040, %v1184
        %v1186 = vpop.f32.mrb[0].mxu0
        %1187 = vmatprep.mubr.f32.mxu0 0.0
        %1188 = vmatmul.mubr.f32.gmra.mrb[0].mxu0 %v857
        %v1189 = vpop.f32.mrb[0].mxu0
        %v1190 = vadd.f32 %v1045, %v1189
        %v1191 = vpop.f32.mrb[0].mxu0
        %1192 = vmatprep.mubr.f32.mxu0 0.0
        %1193 = vmatmul.mubr.f32.gmra.mrb[0].mxu0 %v860
        %v1194 = vpop.f32.mrb[0].mxu0
        %v1195 = vadd.f32 %v1050, %v1194
        %v1196 = vpop.f32.mrb[0].mxu0
        %1197 = vmatprep.mubr.f32.mxu0 0.0
        %1198 = vmatmul.mubr.f32.gmra.mrb[0].mxu0 %v863
        %v1199 = vpop.f32.mrb[0].mxu0
        %v1200 = vadd.f32 %v1055, %v1199
        %v1201 = vpop.f32.mrb[0].mxu0
        %1202 = vmatprep.mubr.f32.mxu0 0.0
        %1203 = vmatmul.mubr.f32.gmra.mrb[0].mxu0 %v866
        %v1204 = vpop.f32.mrb[0].mxu0
        %v1205 = vadd.f32 %v1060, %v1204
        %v1206 = vpop.f32.mrb[0].mxu0
        %1207 = vmatprep.mubr.f32.mxu0 0.0
        %1208 = vmatmul.mubr.f32.gmra.mrb[0].mxu0 %v869
        %v1209 = vpop.f32.mrb[0].mxu0
        %v1210 = vadd.f32 %v1065, %v1209
        %v1211 = vpop.f32.mrb[0].mxu0
        %1212 = vmatprep.mubr.f32.mxu0 0.0
        %1213 = vmatmul.mubr.f32.gmra.mrb[0].mxu0 %v872
        %v1214 = vpop.f32.mrb[0].mxu0
        %v1215 = vadd.f32 %v1070, %v1214
        %v1216 = vpop.f32.mrb[0].mxu0
        %1217 = vdwg.mxu0
        %1218 = vst [vmem:[%s226] sm:$0xff] %v1140
        %1219 = vst [vmem:[%s226 + $0x8] sm:$0xff] %v1145
        %1220 = vst [vmem:[%s226 + $0x10] sm:$0xff] %v1150
        %1221 = vst [vmem:[%s226 + $0x18] sm:$0xff] %v1155
        %1222 = vst [vmem:[%s226 + $0x20] sm:$0xff] %v1160
        %1223 = vst [vmem:[%s226 + $0x28] sm:$0xff] %v1165
        %1224 = vst [vmem:[%s226 + $0x30] sm:$0xff] %v1170
        %1225 = vst [vmem:[%s226 + $0x38] sm:$0xff] %v1175
        %1226 = vst [vmem:[%s226 + $0x40] sm:$0xff] %v1180
        %1227 = vst [vmem:[%s226 + $0x48] sm:$0xff] %v1185
        %1228 = vst [vmem:[%s226 + $0x50] sm:$0xff] %v1190
        %1229 = vst [vmem:[%s226 + $0x58] sm:$0xff] %v1195
        %1230 = vst [vmem:[%s226 + $0x60] sm:$0xff] %v1200
        %1231 = vst [vmem:[%s226 + $0x68] sm:$0xff] %v1205
        %1232 = vst [vmem:[%s226 + $0x70] sm:$0xff] %v1210
        %1233 = vst [vmem:[%s226 + $0x78] sm:$0xff] %v1215
        %s1234 = sand.u32 %s134, 1
        %s1235 = sand.u32 %s134, 1
        %s1236 = smul.addr %s1235, 128
        %s1237 = scalar_lea.vmem [#allocation2], %s1236
        // Predicated region
        $region41: #{feed_forward.1} parent=39 // pred_check
          %p1238 = pneg %p144
        $region42: #{feed_forward.1} parent=39 // pred_check_branch
          %1240 = sbr.rel (%p1238) target = $region44
        $region43: #{feed_forward.1} parent=39 // pred_region
          %s1241 = smul.u32 16, %s16
          %s1242 = ssub.s32 25, %s1241
          %p1243 = scmp.lt.s32.totalorder %s1242, 16
          %s1244 = scalar_select %p1243, %s1242, 16
          %s1245 = smul.u32 128, %s1244
          %p1246 = scmp.ne.s32.totalorder 0, %s1245
          %s1247 = smul.addr %s1241, 8
          %s1248 = scalar_lea.vmem %s5, %s1247
          // Predicated region
          $region45: #{feed_forward.1} parent=43 // pred_check
            %p1249 = pneg %p1246
          $region46: #{feed_forward.1} parent=43 // pred_check_branch
            %1251 = sbr.rel (%p1249) target = $region48
          $region47: #{feed_forward.1} parent=43 // pred_region
            // Predicated region
            $region49: #{feed_forward.1} parent=47 // pred_check
              _
            $region50: #{feed_forward.1} parent=47 // pred_check_branch
              %1253 = sbr.rel (0) target = $region52
            $region51: #{feed_forward.1} parent=47 // pred_region
              // Predicated region
              $region71: #{feed_forward.1} parent=51 // pred_check
                _
              $region72: #{feed_forward.1} parent=51 // pred_check_branch
                %1332 = sbr.rel (0) target = $region74
              $region73: #{feed_forward.1} parent=51 // pred_region
                %s1333 = sshrl.u32 %s1244, 4
                // While loop
                $region75: #{feed_forward.1} parent=73 // loop_pre_header
                  _
                $region76: #{feed_forward.1} parent=73 // loop_header
                  %s1335 = sphi 0, %s1337
                  %p1336 = scmp.ge.s32.totalorder %s1335, %s1333
                  %s1340 = sphi 0, %s1377
                  %s1341 = sphi %s1237, %s1380
                  %s1342 = sphi %s1248, %s1381
                $region77: #{feed_forward.1} parent=73 // loop_header_branch
                  %1339 = sbr.rel (%p1336) target = $region81
                $region78: #{feed_forward.1} parent=73 // loop_body
                  %v1343 = vld [vmem:[%s1341] sm:$0xff]
                  %1344 = vst [vmem:[%s1342] sm:$0xff] %v1343
                  %v1345 = vld [vmem:[%s1341 + $0x8] sm:$0xff]
                  %1346 = vst [vmem:[%s1342 + $0x8] sm:$0xff] %v1345
                  %v1347 = vld [vmem:[%s1341 + $0x10] sm:$0xff]
                  %1348 = vst [vmem:[%s1342 + $0x10] sm:$0xff] %v1347
                  %v1349 = vld [vmem:[%s1341 + $0x18] sm:$0xff]
                  %1350 = vst [vmem:[%s1342 + $0x18] sm:$0xff] %v1349
                  %v1351 = vld [vmem:[%s1341 + $0x20] sm:$0xff]
                  %1352 = vst [vmem:[%s1342 + $0x20] sm:$0xff] %v1351
                  %v1353 = vld [vmem:[%s1341 + $0x28] sm:$0xff]
                  %1354 = vst [vmem:[%s1342 + $0x28] sm:$0xff] %v1353
                  %v1355 = vld [vmem:[%s1341 + $0x30] sm:$0xff]
                  %1356 = vst [vmem:[%s1342 + $0x30] sm:$0xff] %v1355
                  %v1357 = vld [vmem:[%s1341 + $0x38] sm:$0xff]
                  %1358 = vst [vmem:[%s1342 + $0x38] sm:$0xff] %v1357
                  %v1359 = vld [vmem:[%s1341 + $0x40] sm:$0xff]
                  %1360 = vst [vmem:[%s1342 + $0x40] sm:$0xff] %v1359
                  %v1361 = vld [vmem:[%s1341 + $0x48] sm:$0xff]
                  %1362 = vst [vmem:[%s1342 + $0x48] sm:$0xff] %v1361
                  %v1363 = vld [vmem:[%s1341 + $0x50] sm:$0xff]
                  %1364 = vst [vmem:[%s1342 + $0x50] sm:$0xff] %v1363
                  %v1365 = vld [vmem:[%s1341 + $0x58] sm:$0xff]
                  %1366 = vst [vmem:[%s1342 + $0x58] sm:$0xff] %v1365
                  %v1367 = vld [vmem:[%s1341 + $0x60] sm:$0xff]
                  %1368 = vst [vmem:[%s1342 + $0x60] sm:$0xff] %v1367
                  %v1369 = vld [vmem:[%s1341 + $0x68] sm:$0xff]
                  %1370 = vst [vmem:[%s1342 + $0x68] sm:$0xff] %v1369
                  %v1371 = vld [vmem:[%s1341 + $0x70] sm:$0xff]
                  %1372 = vst [vmem:[%s1342 + $0x70] sm:$0xff] %v1371
                  %v1373 = vld [vmem:[%s1341 + $0x78] sm:$0xff]
                  %1374 = vst [vmem:[%s1342 + $0x78] sm:$0xff] %v1373
                  %s1375 = sadd.s32 1, %s1340
                  %p1376 = scmp.ge.s32.totalorder %s1375, %s1333
                  %s1377 = scalar_select %p1376, 0, %s1375
                  %s1378 = smul.u32 %s1377, 128
                  %s1379 = smul.u32 %s1377, 128
                  %s1380 = scalar_lea.vmem %s1237, %s1378 [#allocation2]
                  %s1381 = scalar_lea.vmem %s1248, %s1379
                $region79: #{feed_forward.1} parent=73 // loop_footer
                  %s1337 = sadd.s32 %s1335, 1
                $region80: #{feed_forward.1} parent=73 // loop_footer_branch
                  %1334 = sbr.rel target = $region76
                $region81: #{feed_forward.1} parent=73 // loop_exit
                  _
                %s1382 = sshrl.u32 %s1244, 4
                %s1383 = sand.u32 %s1244, 15
                %s1384 = smul.u32 %s1382, 16
                %s1385 = smul.u32 8, %s1384
                %s1386 = scalar_lea.vmem %s1237, %s1385 [#allocation2]
                %s1387 = smul.u32 8, %s1384
                %s1388 = scalar_lea.vmem %s1248, %s1387
                // While loop
                $region82: #{feed_forward.1} parent=73 // loop_pre_header
                  _
                $region83: #{feed_forward.1} parent=73 // loop_header
                  %s1390 = sphi 0, %s1392
                  %p1391 = scmp.ge.s32.totalorder %s1390, %s1383
                  %s1395 = sphi 0, %s1402
                  %s1396 = sphi %s1386, %s1405
                  %s1397 = sphi %s1388, %s1406
                $region84: #{feed_forward.1} parent=73 // loop_header_branch
                  %1394 = sbr.rel (%p1391) target = $region88
                $region85: #{feed_forward.1} parent=73 // loop_body
                  %v1398 = vld [vmem:[%s1396] sm:$0xff]
                  %1399 = vst [vmem:[%s1397] sm:$0xff] %v1398
                  %s1400 = sadd.s32 1, %s1395
                  %p1401 = scmp.ge.s32.totalorder %s1400, %s1383
                  %s1402 = scalar_select %p1401, 0, %s1400
                  %s1403 = smul.u32 %s1402, 8
                  %s1404 = smul.u32 %s1402, 8
                  %s1405 = scalar_lea.vmem %s1386, %s1403 [#allocation2]
                  %s1406 = scalar_lea.vmem %s1388, %s1404
                $region86: #{feed_forward.1} parent=73 // loop_footer
                  %s1392 = sadd.s32 %s1390, 1
                $region87: #{feed_forward.1} parent=73 // loop_footer_branch
                  %1389 = sbr.rel target = $region83
                $region88: #{feed_forward.1} parent=73 // loop_exit
                  _
              $region74: #{feed_forward.1} parent=51 // pred_fallthru
                _
              // Predicated region
              $region89: #{feed_forward.1} parent=51 // pred_check
                _
              $region90: #{feed_forward.1} parent=51 // pred_check_branch
                %1408 = sbr.rel target = $region92
              $region91: #{feed_forward.1} parent=51 // pred_region
                _
              $region92: #{feed_forward.1} parent=51 // pred_fallthru
                _
            $region52: #{feed_forward.1} parent=47 // pred_fallthru
              _
            // Predicated region
            $region53: #{feed_forward.1} parent=47 // pred_check
              _
            $region54: #{feed_forward.1} parent=47 // pred_check_branch
              %1255 = sbr.rel target = $region56
            $region55: #{feed_forward.1} parent=47 // pred_region
              %s1257 = sshrl.u32 %s1244, 4
              // While loop
              $region57: #{feed_forward.1} parent=55 // loop_pre_header
                _
              $region58: #{feed_forward.1} parent=55 // loop_header
                %s1259 = sphi 0, %s1261
                %p1260 = scmp.ge.s32.totalorder %s1259, %s1257
                %s1264 = sphi 0, %s1301
                %s1265 = sphi %s1237, %s1304
                %s1266 = sphi %s1248, %s1305
              $region59: #{feed_forward.1} parent=55 // loop_header_branch
                %1263 = sbr.rel (%p1260) target = $region63
              $region60: #{feed_forward.1} parent=55 // loop_body
                %v1267 = vld [vmem:[%s1265] sm:$0xff]
                %1268 = vst [vmem:[%s1266] sm:$0xff] %v1267
                %v1269 = vld [vmem:[%s1265 + $0x8] sm:$0xff]
                %1270 = vst [vmem:[%s1266 + $0x8] sm:$0xff] %v1269
                %v1271 = vld [vmem:[%s1265 + $0x10] sm:$0xff]
                %1272 = vst [vmem:[%s1266 + $0x10] sm:$0xff] %v1271
                %v1273 = vld [vmem:[%s1265 + $0x18] sm:$0xff]
                %1274 = vst [vmem:[%s1266 + $0x18] sm:$0xff] %v1273
                %v1275 = vld [vmem:[%s1265 + $0x20] sm:$0xff]
                %1276 = vst [vmem:[%s1266 + $0x20] sm:$0xff] %v1275
                %v1277 = vld [vmem:[%s1265 + $0x28] sm:$0xff]
                %1278 = vst [vmem:[%s1266 + $0x28] sm:$0xff] %v1277
                %v1279 = vld [vmem:[%s1265 + $0x30] sm:$0xff]
                %1280 = vst [vmem:[%s1266 + $0x30] sm:$0xff] %v1279
                %v1281 = vld [vmem:[%s1265 + $0x38] sm:$0xff]
                %1282 = vst [vmem:[%s1266 + $0x38] sm:$0xff] %v1281
                %v1283 = vld [vmem:[%s1265 + $0x40] sm:$0xff]
                %1284 = vst [vmem:[%s1266 + $0x40] sm:$0xff] %v1283
                %v1285 = vld [vmem:[%s1265 + $0x48] sm:$0xff]
                %1286 = vst [vmem:[%s1266 + $0x48] sm:$0xff] %v1285
                %v1287 = vld [vmem:[%s1265 + $0x50] sm:$0xff]
                %1288 = vst [vmem:[%s1266 + $0x50] sm:$0xff] %v1287
                %v1289 = vld [vmem:[%s1265 + $0x58] sm:$0xff]
                %1290 = vst [vmem:[%s1266 + $0x58] sm:$0xff] %v1289
                %v1291 = vld [vmem:[%s1265 + $0x60] sm:$0xff]
                %1292 = vst [vmem:[%s1266 + $0x60] sm:$0xff] %v1291
                %v1293 = vld [vmem:[%s1265 + $0x68] sm:$0xff]
                %1294 = vst [vmem:[%s1266 + $0x68] sm:$0xff] %v1293
                %v1295 = vld [vmem:[%s1265 + $0x70] sm:$0xff]
                %1296 = vst [vmem:[%s1266 + $0x70] sm:$0xff] %v1295
                %v1297 = vld [vmem:[%s1265 + $0x78] sm:$0xff]
                %1298 = vst [vmem:[%s1266 + $0x78] sm:$0xff] %v1297
                %s1299 = sadd.s32 1, %s1264
                %p1300 = scmp.ge.s32.totalorder %s1299, %s1257
                %s1301 = scalar_select %p1300, 0, %s1299
                %s1302 = smul.u32 %s1301, 128
                %s1303 = smul.u32 %s1301, 128
                %s1304 = scalar_lea.vmem %s1237, %s1302 [#allocation2]
                %s1305 = scalar_lea.vmem %s1248, %s1303
              $region61: #{feed_forward.1} parent=55 // loop_footer
                %s1261 = sadd.s32 %s1259, 1
              $region62: #{feed_forward.1} parent=55 // loop_footer_branch
                %1258 = sbr.rel target = $region58
              $region63: #{feed_forward.1} parent=55 // loop_exit
                _
              %s1306 = sshrl.u32 %s1244, 4
              %s1307 = sand.u32 %s1244, 15
              %s1308 = smul.u32 %s1306, 16
              %s1309 = smul.u32 8, %s1308
              %s1310 = scalar_lea.vmem %s1237, %s1309 [#allocation2]
              %s1311 = smul.u32 8, %s1308
              %s1312 = scalar_lea.vmem %s1248, %s1311
              // While loop
              $region64: #{feed_forward.1} parent=55 // loop_pre_header
                _
              $region65: #{feed_forward.1} parent=55 // loop_header
                %s1314 = sphi 0, %s1316
                %p1315 = scmp.ge.s32.totalorder %s1314, %s1307
                %s1319 = sphi 0, %s1326
                %s1320 = sphi %s1310, %s1329
                %s1321 = sphi %s1312, %s1330
              $region66: #{feed_forward.1} parent=55 // loop_header_branch
                %1318 = sbr.rel (%p1315) target = $region70
              $region67: #{feed_forward.1} parent=55 // loop_body
                %v1322 = vld [vmem:[%s1320] sm:$0xff]
                %1323 = vst [vmem:[%s1321] sm:$0xff] %v1322
                %s1324 = sadd.s32 1, %s1319
                %p1325 = scmp.ge.s32.totalorder %s1324, %s1307
                %s1326 = scalar_select %p1325, 0, %s1324
                %s1327 = smul.u32 %s1326, 8
                %s1328 = smul.u32 %s1326, 8
                %s1329 = scalar_lea.vmem %s1310, %s1327 [#allocation2]
                %s1330 = scalar_lea.vmem %s1312, %s1328
              $region68: #{feed_forward.1} parent=55 // loop_footer
                %s1316 = sadd.s32 %s1314, 1
              $region69: #{feed_forward.1} parent=55 // loop_footer_branch
                %1313 = sbr.rel target = $region65
              $region70: #{feed_forward.1} parent=55 // loop_exit
                _
            $region56: #{feed_forward.1} parent=47 // pred_fallthru
              _
          $region48: #{feed_forward.1} parent=43 // pred_fallthru
            _
          %1409 = vnop
        $region44: #{feed_forward.1} parent=39 // pred_fallthru
          _
      $region40: #{feed_forward.1} parent=5 // pred_fallthru
        _
      %p1410 = scmp.le.s32.totalorder 2, %s11
      // Predicated region
      $region93: #{feed_forward.1} parent=5 // pred_check
        %p1411 = pneg %p1410
      $region94: #{feed_forward.1} parent=5 // pred_check_branch
        %1413 = sbr.rel (%p1411) target = $region96
      $region95: #{feed_forward.1} parent=5 // pred_region
        %s1414 = ssub.s32 %s11, 2
        // Predicated region
        $region97: #{feed_forward.1} parent=95 // pred_check
          %p1415 = pneg %p150
        $region98: #{feed_forward.1} parent=95 // pred_check_branch
          %1417 = sbr.rel (%p1415) target = $region100
        $region99: #{feed_forward.1} parent=95 // pred_region
          %s1418 = sand.u32 %s135, 1
          %s1419 = sand.u32 %s135, 1
          %s1420 = smul.addr %s1419, 128
          %s1421 = scalar_lea.vmem [#allocation2], %s1420
        $region100: #{feed_forward.1} parent=95 // pred_fallthru
          _
      $region96: #{feed_forward.1} parent=5 // pred_fallthru
        _
    $region6: #{feed_forward.1} parent=1 // loop_footer
      %s15 = sadd.s32 1, %s11
    $region7: #{feed_forward.1} parent=1 // loop_footer_branch
      %10 = sbr.rel target = $region3
    $region8: #{feed_forward.1} parent=1 // loop_exit
      _

</llo_original>
